<compile_context>
chip_gen: v7x
topology: tpu7x:2x2x1
jax: 0.10.0
libtpu: 0.0.40
codegen_flags: <defaults>
</compile_context>

<pallas_src>
import jax
import jax.numpy as jnp
from jax import lax
from jax.experimental import pallas as pl
from jax.experimental.pallas import tpu as pltpu


def _round_up(n, m):
    return ((n + m - 1) // m) * m


def _rows_per_tile(H, Wpp, target_rows=512):
    """Largest divisor rt of H with rt*Wpp <= target_rows (prefer >= 2 tiles)."""
    cands = [r for r in range(1, H + 1)
             if H % r == 0 and r * Wpp <= target_rows and (r < H or H == 1)]
    return max(cands) if cands else 1


# ---------------------------------------------------------------------------
# Fused Pallas kernel: one row tile of [3x3 conv + bias + LeakyReLU(0.1)
#                      -> 1x1 conv + bias + LeakyReLU(0.1)]
# ---------------------------------------------------------------------------
def _make_conv_out_kernel(tm, Wpp, k):
    """One grid step computes output rows [t*tm, (t+1)*tm) of one image.

    Layer 1: 3x3 conv as k row-shifted matmuls with K = k*Cin (the kw taps are
    folded into the channel axis wrapper-side), f32 accumulation, folded-BN
    bias + LeakyReLU.  Layer 2: 1x1 conv (bf16 MXU, f32 acc) + bias + LeakyReLU.
    The layer-1 activation tile never leaves VMEM/vregs.
    """

    def kernel(xd_ref, w1_ref, b1_ref, w2_ref, b2_ref, o_ref):
        row0 = pl.program_id(1) * tm

        # ---- layer 1: k aligned, fused-K matmuls -> bounded f32 accumulator ----
        acc = None
        for dy in range(k):
            start = pl.multiple_of(row0 + dy * Wpp, 8)   # tm, Wpp are mult. of 8
            slab = xd_ref[0, pl.ds(start, tm), :]        # (tm, k*Cin) bf16
            part = jnp.dot(slab, w1_ref[dy],
                           preferred_element_type=jnp.float32)
            acc = part if acc is None else acc + part
        h1 = acc + b1_ref[...]                           # folded BN bias (layer 1)
        h1 = jnp.maximum(h1, 0.1 * h1)                   # LeakyReLU(0.1)

        # ---- layer 2: 1x1 conv fused in the same kernel ----
        y = jnp.dot(h1.astype(jnp.bfloat16), w2_ref[...],
                    preferred_element_type=jnp.float32)
        y = y + b2_ref[...]                              # folded BN bias (layer 2)
        o_ref[0] = jnp.maximum(y, 0.1 * y).astype(o_ref.dtype)

    return kernel


# ---------------------------------------------------------------------------
# Wrapper-side glue: BN folding, weight packing, padding, pallas_call
# ---------------------------------------------------------------------------
def _fold_bn(params, eps=1e-5):
    """Fold inference BatchNorm (and conv bias) into per-channel weight/bias."""
    w, b, gamma, beta, r_mean, r_var = params
    scale = gamma / jnp.sqrt(r_var + eps)
    return w * scale[:, None, None, None], beta + scale * (b - r_mean)


def _prepare_weights(params1, params2):
    w1, b1 = _fold_bn(params1)          # w1: (C1, Cin, 3, 3)
    w2, b2 = _fold_bn(params2)          # w2: (C2, C1, 1, 1)
    C1, Cin, k, _ = w1.shape
    C2 = w2.shape[0]
    C1p = _round_up(C1, 128)
    C2p = _round_up(C2, 128)

    # (C1, Cin, kh, kw) -> (kh, kw*Cin, C1p): the kw (dx) taps are folded into
    # the contraction dim to match the wrapper-side dx-fused input layout.
    w1_t = jnp.transpose(w1, (2, 3, 1, 0)).reshape(k, k * Cin, C1)
    w1_t = jnp.pad(w1_t, ((0, 0), (0, 0), (0, C1p - C1))).astype(jnp.bfloat16)
    b1_p = jnp.pad(b1, (0, C1p - C1)).reshape(1, C1p).astype(jnp.float32)

    # (C2, C1, 1, 1) -> (C1p, C2p)
    w2_m = jnp.transpose(w2[:, :, 0, 0], (1, 0))
    w2_m = jnp.pad(w2_m, ((0, C1p - C1), (0, C2p - C2))).astype(jnp.bfloat16)
    b2_p = jnp.pad(b2, (0, C2p - C2)).reshape(1, C2p).astype(jnp.float32)

    return w1_t, b1_p, w2_m, b2_p, k, C2, C1p, C2p


def conv_out_forward(x_nchw, params1, params2):
    """Conv_Out forward: ConvLayer(3x3, p=1) -> ConvLayer(1x1). NCHW in/out."""
    N, Cin, H, W = x_nchw.shape
    Wpp = _round_up(W + 2, 8)        # padded row stride, 8-sublane aligned
    M = H * Wpp                      # output rows per image (cols >= W discarded)
    Rd = (H + 2) * Wpp               # dx-fused input rows needed by the kernel
    Rp = (H + 3) * Wpp               # flattened padded-image rows (1 top, 2 bottom)

    w1_t, b1_p, w2_m, b2_p, k, C2, C1p, C2p = _prepare_weights(params1, params2)

    # NCHW -> NHWC, cast bf16, zero-pad (top 1 / bottom 2 / left 1 / right
    # Wpp-W-1), flatten the spatial plane row-major, then fold the k dx taps
    # into the channel axis so every in-kernel LHS slice is 8-sublane aligned
    # and each MXU push contracts K = k*Cin.  No 9x im2col blow-up in HBM.
    x = jnp.transpose(x_nchw, (0, 2, 3, 1)).astype(jnp.bfloat16)
    xp = jnp.pad(x, ((0, 0), (1, 2), (1, Wpp - W - 1), (0, 0)))
    x_flat = xp.reshape(N, Rp, Cin)
    xd = jnp.concatenate([x_flat[:, d:d + Rd, :] for d in range(k)], axis=-1)

    rt = _rows_per_tile(H, Wpp)      # image rows per tile
    tm = rt * Wpp                    # output rows per grid step (multiple of 8)
    T = H // rt                      # row tiles per image

    kernel = _make_conv_out_kernel(tm, Wpp, k)

    # Rough VMEM budget: double-buffered image + output blocks, resident
    # weights, and the per-tile acc/h1/y working set (with margin).
    est = (2 * Rd * k * Cin * 2                    # xd block x2
           + 2 * (k * k * Cin * C1p + C1p * C2p) * 2  # weights (x2 buffers)
           + 2 * tm * C2p * 4                      # output block x2
           + 3 * tm * max(C1p, C2p) * 4)           # acc / h1 / y values
    vmem_limit = int(min(48 * 2**20, max(32 * 2**20, 2 * est)))

    out_flat = pl.pallas_call(
        kernel,
        out_shape=jax.ShapeDtypeStruct((N, M, C2p), jnp.float32),
        grid_spec=pltpu.PrefetchScalarGridSpec(
            num_scalar_prefetch=0,
            grid=(N, T),
            in_specs=[
                # dx-fused image: block index changes only with n -> resident
                # in VMEM across the row-tile axis (no re-DMA per tile).
                pl.BlockSpec((1, Rd, k * Cin), lambda n, t: (n, 0, 0)),
                pl.BlockSpec((k, k * Cin, C1p), lambda n, t: (0, 0, 0)),  # resident
                pl.BlockSpec((1, C1p), lambda n, t: (0, 0)),
                pl.BlockSpec((C1p, C2p), lambda n, t: (0, 0)),            # resident
                pl.BlockSpec((1, C2p), lambda n, t: (0, 0)),
            ],
            out_specs=pl.BlockSpec((1, tm, C2p), lambda n, t: (n, t, 0)),  # lane-dense
        ),
        compiler_params=pltpu.CompilerParams(
            dimension_semantics=("parallel", "parallel"),
            vmem_limit_bytes=vmem_limit),
    )(xd, w1_t, b1_p, w2_m, b2_p)

    # (N, H*Wpp, C2p) -> (N, H, Wpp, C2p); drop alignment-padding columns and
    # zero-padded output channels; back to NCHW.
    out = out_flat.reshape(N, H, Wpp, C2p)[:, :, :W, :C2]
    return jnp.transpose(out, (0, 3, 1, 2))


# ---------------------------------------------------------------------------
# Deterministic parameter init + pure-JAX f32 reference for verification
# ---------------------------------------------------------------------------
def make_convlayer_params(key, cin, cout, k):
    k0, k1, k2, k3, k4, k5 = jax.random.split(key, 6)
    w = 0.1 * jax.random.normal(k0, (cout, cin, k, k), jnp.float32)
    b = 0.1 * jax.random.normal(k1, (cout,), jnp.float32)
    gamma = 1.0 + 0.1 * jax.random.normal(k2, (cout,), jnp.float32)
    beta = 0.1 * jax.random.normal(k3, (cout,), jnp.float32)
    r_mean = 0.1 * jax.random.normal(k4, (cout,), jnp.float32)
    r_var = jnp.abs(jax.random.normal(k5, (cout,), jnp.float32)) + 0.5
    return (w, b, gamma, beta, r_mean, r_var)


def _ref_conv_layer(x_nchw, params, padding, eps=1e-5):
    w, b, gamma, beta, r_mean, r_var = params
    y = lax.conv_general_dilated(
        x_nchw, w, window_strides=(1, 1),
        padding=[(padding, padding), (padding, padding)],
        dimension_numbers=("NCHW", "OIHW", "NCHW"),
    ) + b[None, :, None, None]
    y = (y - r_mean[None, :, None, None]) / jnp.sqrt(r_var[None, :, None, None] + eps)
    y = y * gamma[None, :, None, None] + beta[None, :, None, None]
    return jnp.where(y >= 0.0, y, 0.1 * y)


def ref_conv_out(x_nchw, params1, params2):
    h = _ref_conv_layer(x_nchw, params1, padding=1)
    return _ref_conv_layer(h, params2, padding=0)


if __name__ == "__main__":
    # Small shapes: Conv_Out(in_channels=4, out_channels=8, num_classes=3)
    batch, in_channels, H, W = 2, 4, 16, 16
    out_channels, num_classes = 8, 3
    c_final = 3 * (num_classes + 1 + 4)  # 24

    root = jax.random.PRNGKey(0)
    kx, kp1, kp2 = jax.random.split(root, 3)

    x = jax.random.normal(kx, (batch, in_channels, H, W), jnp.float32)
    params1 = make_convlayer_params(kp1, in_channels, out_channels, 3)
    params2 = make_convlayer_params(kp2, out_channels, c_final, 1)

    fwd = jax.jit(conv_out_forward)
    out = jax.block_until_ready(fwd(x, params1, params2))
    assert out.shape == (batch, c_final, H, W), out.shape

    ref = jax.block_until_ready(ref_conv_out(x, params1, params2))
    max_err = float(jnp.max(jnp.abs(out - ref)))
    # bf16 MXU operands with f32 accumulation -> loosened tolerance vs f32 ref.
    assert jnp.allclose(out, ref, atol=5e-2, rtol=5e-2), max_err

    print("KERNEL_OK")
</pallas_src>

<mosaic_0001>
module attributes {stable_mosaic.version = 11 : i64} {
  func.func @kernel(%arg0: i32, %arg1: i32, %arg2: memref<1x432x12xbf16, #tpu.memory_space<vmem>>, %arg3: memref<3x12x128xbf16, #tpu.memory_space<vmem>>, %arg4: memref<1x128xf32, #tpu.memory_space<vmem>>, %arg5: memref<128x128xbf16, #tpu.memory_space<vmem>>, %arg6: memref<1x128xf32, #tpu.memory_space<vmem>>, %arg7: memref<1x192x128xf32, #tpu.memory_space<vmem>>) attributes {dimension_semantics = [#tpu.dimension_semantics<parallel>, #tpu.dimension_semantics<parallel>], iteration_bounds = array<i64: 2, 2>, scalar_prefetch = 0 : i64, scratch_operands = 0 : i64, tpu.core_type = #tpu.core_type<tc>, window_params = [{transform_indices = @transform_0, window_bounds = array<i64: 1, 432, 12>}, {pipeline_mode = #tpu.pipeline_mode<synchronous>, transform_indices = @transform_1, window_bounds = array<i64: 3, 12, 128>}, {pipeline_mode = #tpu.pipeline_mode<synchronous>, transform_indices = @transform_2, window_bounds = array<i64: 1, 128>}, {pipeline_mode = #tpu.pipeline_mode<synchronous>, transform_indices = @transform_3, window_bounds = array<i64: 128, 128>}, {pipeline_mode = #tpu.pipeline_mode<synchronous>, transform_indices = @transform_4, window_bounds = array<i64: 1, 128>}, {transform_indices = @transform_5, window_bounds = array<i64: 1, 192, 128>}]} {
    %c192_i32 = arith.constant 192 : i32
    %0 = arith.muli %arg1, %c192_i32 : i32
    %c0_i32 = arith.constant 0 : i32
    %1 = arith.addi %0, %c0_i32 : i32
    %2 = tpu.assume_multiple %1, 8 : i32
    %c0 = arith.constant 0 : index
    %3 = arith.index_cast %2 : i32 to index
    %c0_0 = arith.constant 0 : index
    %4 = vector.load %arg2[%c0, %3, %c0_0] : memref<1x432x12xbf16, #tpu.memory_space<vmem>>, vector<1x192x12xbf16>
    %5 = vector.shape_cast %4 : vector<1x192x12xbf16> to vector<192x12xbf16>
    %c0_1 = arith.constant 0 : index
    %c0_2 = arith.constant 0 : index
    %c0_3 = arith.constant 0 : index
    %6 = vector.load %arg3[%c0_1, %c0_2, %c0_3] : memref<3x12x128xbf16, #tpu.memory_space<vmem>>, vector<1x12x128xbf16>
    %7 = vector.shape_cast %6 : vector<1x12x128xbf16> to vector<12x128xbf16>
    %cst = arith.constant dense<0.000000e+00> : vector<192x128xf32>
    %8 = tpu.matmul %5, %7, %cst {dimension_numbers = #tpu.dot_dimension_numbers<[1], [0], [0], [1], [0, 0, 1, 1], [], []>} : vector<192x12xbf16>, vector<12x128xbf16>, vector<192x128xf32> -> vector<192x128xf32>
    %c24_i32 = arith.constant 24 : i32
    %9 = arith.addi %0, %c24_i32 : i32
    %10 = tpu.assume_multiple %9, 8 : i32
    %c0_4 = arith.constant 0 : index
    %11 = arith.index_cast %10 : i32 to index
    %c0_5 = arith.constant 0 : index
    %12 = vector.load %arg2[%c0_4, %11, %c0_5] : memref<1x432x12xbf16, #tpu.memory_space<vmem>>, vector<1x192x12xbf16>
    %13 = vector.shape_cast %12 : vector<1x192x12xbf16> to vector<192x12xbf16>
    %c1 = arith.constant 1 : index
    %c0_6 = arith.constant 0 : index
    %c0_7 = arith.constant 0 : index
    %14 = vector.load %arg3[%c1, %c0_6, %c0_7] : memref<3x12x128xbf16, #tpu.memory_space<vmem>>, vector<1x12x128xbf16>
    %15 = vector.shape_cast %14 : vector<1x12x128xbf16> to vector<12x128xbf16>
    %cst_8 = arith.constant dense<0.000000e+00> : vector<192x128xf32>
    %16 = tpu.matmul %13, %15, %cst_8 {dimension_numbers = #tpu.dot_dimension_numbers<[1], [0], [0], [1], [0, 0, 1, 1], [], []>} : vector<192x12xbf16>, vector<12x128xbf16>, vector<192x128xf32> -> vector<192x128xf32>
    %17 = arith.addf %8, %16 : vector<192x128xf32>
    %c48_i32 = arith.constant 48 : i32
    %18 = arith.addi %0, %c48_i32 : i32
    %19 = tpu.assume_multiple %18, 8 : i32
    %c0_9 = arith.constant 0 : index
    %20 = arith.index_cast %19 : i32 to index
    %c0_10 = arith.constant 0 : index
    %21 = vector.load %arg2[%c0_9, %20, %c0_10] : memref<1x432x12xbf16, #tpu.memory_space<vmem>>, vector<1x192x12xbf16>
    %22 = vector.shape_cast %21 : vector<1x192x12xbf16> to vector<192x12xbf16>
    %c2 = arith.constant 2 : index
    %c0_11 = arith.constant 0 : index
    %c0_12 = arith.constant 0 : index
    %23 = vector.load %arg3[%c2, %c0_11, %c0_12] : memref<3x12x128xbf16, #tpu.memory_space<vmem>>, vector<1x12x128xbf16>
    %24 = vector.shape_cast %23 : vector<1x12x128xbf16> to vector<12x128xbf16>
    %cst_13 = arith.constant dense<0.000000e+00> : vector<192x128xf32>
    %25 = tpu.matmul %22, %24, %cst_13 {dimension_numbers = #tpu.dot_dimension_numbers<[1], [0], [0], [1], [0, 0, 1, 1], [], []>} : vector<192x12xbf16>, vector<12x128xbf16>, vector<192x128xf32> -> vector<192x128xf32>
    %26 = arith.addf %17, %25 : vector<192x128xf32>
    %c0_14 = arith.constant 0 : index
    %c0_15 = arith.constant 0 : index
    %27 = vector.load %arg4[%c0_14, %c0_15] : memref<1x128xf32, #tpu.memory_space<vmem>>, vector<1x128xf32>
    %28 = vector.broadcast %27 : vector<1x128xf32> to vector<192x128xf32>
    %29 = arith.addf %26, %28 : vector<192x128xf32>
    %cst_16 = arith.constant 1.000000e-01 : f32
    %30 = vector.broadcast %cst_16 : f32 to vector<192x128xf32>
    %31 = arith.mulf %30, %29 : vector<192x128xf32>
    %32 = arith.maximumf %29, %31 : vector<192x128xf32>
    %33 = arith.truncf %32 : vector<192x128xf32> to vector<192x128xbf16>
    %c0_17 = arith.constant 0 : index
    %c0_18 = arith.constant 0 : index
    %34 = vector.load %arg5[%c0_17, %c0_18] : memref<128x128xbf16, #tpu.memory_space<vmem>>, vector<128x128xbf16>
    %cst_19 = arith.constant dense<0.000000e+00> : vector<192x128xf32>
    %35 = tpu.matmul %33, %34, %cst_19 {dimension_numbers = #tpu.dot_dimension_numbers<[1], [0], [0], [1], [0, 0, 1, 1], [], []>} : vector<192x128xbf16>, vector<128x128xbf16>, vector<192x128xf32> -> vector<192x128xf32>
    %c0_20 = arith.constant 0 : index
    %c0_21 = arith.constant 0 : index
    %36 = vector.load %arg6[%c0_20, %c0_21] : memref<1x128xf32, #tpu.memory_space<vmem>>, vector<1x128xf32>
    %37 = vector.broadcast %36 : vector<1x128xf32> to vector<192x128xf32>
    %38 = arith.addf %35, %37 : vector<192x128xf32>
    %cst_22 = arith.constant 1.000000e-01 : f32
    %39 = vector.broadcast %cst_22 : f32 to vector<192x128xf32>
    %40 = arith.mulf %39, %38 : vector<192x128xf32>
    %41 = arith.maximumf %38, %40 : vector<192x128xf32>
    %c0_23 = arith.constant 0 : index
    %c0_24 = arith.constant 0 : index
    %c0_25 = arith.constant 0 : index
    %42 = vector.load %arg7[%c0_23, %c0_24, %c0_25] : memref<1x192x128xf32, #tpu.memory_space<vmem>>, vector<1x192x128xf32>
    %43 = vector.shape_cast %42 : vector<1x192x128xf32> to vector<192x128xf32>
    %44 = vector.shape_cast %41 : vector<192x128xf32> to vector<1x192x128xf32>
    tpu.vector_store %arg7[%c0_23, %c0_24, %c0_25], %44 {strides = array<i32>} : memref<1x192x128xf32, #tpu.memory_space<vmem>>, vector<1x192x128xf32>,
    return
  }
  func.func @transform_0(%arg0: i32, %arg1: i32) -> (i32, i32, i32) {
    %c0_i32 = arith.constant 0 : i32
    %c0_i32_0 = arith.constant 0 : i32
    %c0_i32_1 = arith.constant 0 : i32
    return %arg0, %c0_i32, %c0_i32_0 : i32, i32, i32
  }
  func.func @transform_1(%arg0: i32, %arg1: i32) -> (i32, i32, i32) {
    %c0_i32 = arith.constant 0 : i32
    %c0_i32_0 = arith.constant 0 : i32
    %c0_i32_1 = arith.constant 0 : i32
    %c0_i32_2 = arith.constant 0 : i32
    return %c0_i32, %c0_i32_0, %c0_i32_1 : i32, i32, i32
  }
  func.func @transform_2(%arg0: i32, %arg1: i32) -> (i32, i32) {
    %c0_i32 = arith.constant 0 : i32
    %c0_i32_0 = arith.constant 0 : i32
    %c0_i32_1 = arith.constant 0 : i32
    return %c0_i32, %c0_i32_0 : i32, i32
  }
  func.func @transform_3(%arg0: i32, %arg1: i32) -> (i32, i32) {
    %c0_i32 = arith.constant 0 : i32
    %c0_i32_0 = arith.constant 0 : i32
    %c0_i32_1 = arith.constant 0 : i32
    return %c0_i32, %c0_i32_0 : i32, i32
  }
  func.func @transform_4(%arg0: i32, %arg1: i32) -> (i32, i32) {
    %c0_i32 = arith.constant 0 : i32
    %c0_i32_0 = arith.constant 0 : i32
    %c0_i32_1 = arith.constant 0 : i32
    return %c0_i32, %c0_i32_0 : i32, i32
  }
  func.func @transform_5(%arg0: i32, %arg1: i32) -> (i32, i32, i32) {
    %c0_i32 = arith.constant 0 : i32
    %c0_i32_0 = arith.constant 0 : i32
    return %arg0, %arg1, %c0_i32 : i32, i32, i32
  }
}

</mosaic_0001>

<llo_original>
// kernel: conv_out_forward.1
$region0: #{conv_out_forward.1}
  #allocation0 [shape = 'u32[]', space=smem, size = 0x4, offset = 0x4, fixed_abs, tag = 'smem constant byte address 0x4 - core index']
  #allocation1 [shape = 'u32[144,128]{1,0:T(1,128)}', space=vmem, size = 0x12000, scoped, tag = 'internal scratch']
  %s0 = inlined_call_operand.vmem [shape: bf16[2,432,12], index: 0, kind: input, shape index: {}]
  %s1 = inlined_call_operand.vmem [shape: bf16[3,12,128], index: 1, kind: input, shape index: {}]
  %s2 = inlined_call_operand.vmem [shape: f32[1,128], index: 2, kind: input, shape index: {}]
  %s3 = inlined_call_operand.vmem [shape: bf16[128,128], index: 3, kind: input, shape index: {}]
  %s4 = inlined_call_operand.vmem [shape: f32[1,128], index: 4, kind: input, shape index: {}]
  %s5 = inlined_call_operand.vmem [shape: f32[2,384,128], index: 5, kind: output, shape index: {}]
  %s6 = sld [smem:[#allocation0]]
  $region53: #{conv_out_forward.1} parent=0
    _
  %s8 = ssub.s32 1, %s6
  %s9 = scalar_select 0, %s8, %s6
  loop: start=0, step=1, limit=6
  $region2: #{conv_out_forward.1} parent=0 // loop_pre_header
    _
  $region3: #{conv_out_forward.1} parent=0 // loop_header
    %s11 = sphi 0, %s15
    %p12 = scmp.ge.s32.totalorder %s11, 6
    %s18 = sphi 0, %s30
    %s19 = sphi 0, %s26
    %s20 = sphi 0, %s18
    %s21 = sphi 0, %s19
    %s22 = sphi 0, %s20
    %s23 = sphi 0, %s21
    %s33 = sphi 0, %s35
    %s36 = sphi 0, %s33
    %s37 = sphi 0, %s36
    %s53 = sphi 0, %s37
    %s57 = sphi 0, %s57
    %s59 = sphi 0, %s57
    %s60 = sphi 0, %s59
    %s74 = sphi 0, %s60
    %s78 = sphi 0, %s78
    %s80 = sphi 0, %s78
    %s81 = sphi 0, %s80
    %s95 = sphi 0, %s81
    %s99 = sphi 0, %s99
    %s101 = sphi 0, %s99
    %s102 = sphi 0, %s101
    %s116 = sphi 0, %s102
    %s120 = sphi 0, %s120
    %s122 = sphi 0, %s120
    %s123 = sphi 0, %s122
    %s137 = sphi 0, %s123
    %s145 = sphi 0, %s147
    %s148 = sphi 0, %s145
    %s149 = sphi 0, %s148
    %s165 = sphi 0, %s149
  $region4: #{conv_out_forward.1} parent=0 // loop_header_branch
    %14 = sbr.rel (%p12) target = $region8
  $region5: #{conv_out_forward.1} parent=0 // loop_body
    %s16 = ssub.s32 %s11, 1
    %s17 = ssub.s32 %s11, 2
    %s24 = sadd.s32 1, %s19
    %p25 = scmp.ge.s32.totalorder %s24, 2
    %s26 = scalar_select %p25, 0, %s24
    %s27 = sadd.s32 1, %s18
    %s28 = scalar_select %p25, %s27, %s18
    %p29 = scmp.ge.s32.totalorder %s28, 2
    %s30 = scalar_select %p29, 0, %s28
    %s31 = ssub.s32 %s18, %s30
    %p32 = scmp.eq.s32.totalorder %s31, 0
    %s34 = sadd.s32 %s33, 1
    %s35 = scalar_select %p32, %s33, %s34
    %p38 = pneg %p32
    %p39 = scmp.eq.s32.totalorder %s11, 3
    %p40 = por %p38, %p39
    %p41 = scmp.ne.s32.totalorder %s33, %s36
    %p42 = scmp.eq.s32.totalorder %s11, 0
    %p43 = por %p41, %p42
    %p44 = scmp.ne.s32.totalorder %s33, %s36
    %p45 = scmp.eq.s32.totalorder %s16, 3
    %p46 = por %p44, %p45
    %p47 = scmp.ne.s32.totalorder %s36, %s37
    %p48 = scmp.eq.s32.totalorder %s16, 0
    %p49 = por %p47, %p48
    %p50 = scmp.ne.s32.totalorder %s36, %s37
    %p51 = scmp.eq.s32.totalorder %s17, 3
    %p52 = por %p50, %p51
    %p54 = scmp.ne.s32.totalorder %s37, %s53
    %p55 = scmp.eq.s32.totalorder %s17, 0
    %p56 = por %p54, %p55
    %s58 = sadd.s32 %s57, 1
    %p61 = scmp.eq.s32.totalorder %s11, 3
    %p62 = scmp.ne.s32.totalorder %s57, %s59
    %p63 = scmp.eq.s32.totalorder %s11, 0
    %p64 = por %p62, %p63
    %p65 = scmp.ne.s32.totalorder %s57, %s59
    %p66 = scmp.eq.s32.totalorder %s16, 3
    %p67 = por %p65, %p66
    %p68 = scmp.ne.s32.totalorder %s59, %s60
    %p69 = scmp.eq.s32.totalorder %s16, 0
    %p70 = por %p68, %p69
    %p71 = scmp.ne.s32.totalorder %s59, %s60
    %p72 = scmp.eq.s32.totalorder %s17, 3
    %p73 = por %p71, %p72
    %p75 = scmp.ne.s32.totalorder %s60, %s74
    %p76 = scmp.eq.s32.totalorder %s17, 0
    %p77 = por %p75, %p76
    %s79 = sadd.s32 %s78, 1
    %p82 = scmp.eq.s32.totalorder %s11, 3
    %p83 = scmp.ne.s32.totalorder %s78, %s80
    %p84 = scmp.eq.s32.totalorder %s11, 0
    %p85 = por %p83, %p84
    %p86 = scmp.ne.s32.totalorder %s78, %s80
    %p87 = scmp.eq.s32.totalorder %s16, 3
    %p88 = por %p86, %p87
    %p89 = scmp.ne.s32.totalorder %s80, %s81
    %p90 = scmp.eq.s32.totalorder %s16, 0
    %p91 = por %p89, %p90
    %p92 = scmp.ne.s32.totalorder %s80, %s81
    %p93 = scmp.eq.s32.totalorder %s17, 3
    %p94 = por %p92, %p93
    %p96 = scmp.ne.s32.totalorder %s81, %s95
    %p97 = scmp.eq.s32.totalorder %s17, 0
    %p98 = por %p96, %p97
    %s100 = sadd.s32 %s99, 1
    %p103 = scmp.eq.s32.totalorder %s11, 3
    %p104 = scmp.ne.s32.totalorder %s99, %s101
    %p105 = scmp.eq.s32.totalorder %s11, 0
    %p106 = por %p104, %p105
    %p107 = scmp.ne.s32.totalorder %s99, %s101
    %p108 = scmp.eq.s32.totalorder %s16, 3
    %p109 = por %p107, %p108
    %p110 = scmp.ne.s32.totalorder %s101, %s102
    %p111 = scmp.eq.s32.totalorder %s16, 0
    %p112 = por %p110, %p111
    %p113 = scmp.ne.s32.totalorder %s101, %s102
    %p114 = scmp.eq.s32.totalorder %s17, 3
    %p115 = por %p113, %p114
    %p117 = scmp.ne.s32.totalorder %s102, %s116
    %p118 = scmp.eq.s32.totalorder %s17, 0
    %p119 = por %p117, %p118
    %s121 = sadd.s32 %s120, 1
    %p124 = scmp.eq.s32.totalorder %s11, 3
    %p125 = scmp.ne.s32.totalorder %s120, %s122
    %p126 = scmp.eq.s32.totalorder %s11, 0
    %p127 = por %p125, %p126
    %p128 = scmp.ne.s32.totalorder %s120, %s122
    %p129 = scmp.eq.s32.totalorder %s16, 3
    %p130 = por %p128, %p129
    %p131 = scmp.ne.s32.totalorder %s122, %s123
    %p132 = scmp.eq.s32.totalorder %s16, 0
    %p133 = por %p131, %p132
    %p134 = scmp.ne.s32.totalorder %s122, %s123
    %p135 = scmp.eq.s32.totalorder %s17, 3
    %p136 = por %p134, %p135
    %p138 = scmp.ne.s32.totalorder %s123, %s137
    %p139 = scmp.eq.s32.totalorder %s17, 0
    %p140 = por %p138, %p139
    %s141 = ssub.s32 %s18, %s30
    %s142 = ssub.s32 %s19, %s26
    %s143 = sor.u32 %s141, %s142
    %p144 = scmp.eq.s32.totalorder %s143, 0
    %s146 = sadd.s32 %s145, 1
    %s147 = scalar_select %p144, %s145, %s146
    %p150 = pneg %p144
    %p151 = scmp.eq.s32.totalorder %s11, 3
    %p152 = por %p150, %p151
    %p153 = scmp.ne.s32.totalorder %s145, %s148
    %p154 = scmp.eq.s32.totalorder %s11, 0
    %p155 = por %p153, %p154
    %p156 = scmp.ne.s32.totalorder %s145, %s148
    %p157 = scmp.eq.s32.totalorder %s16, 3
    %p158 = por %p156, %p157
    %p159 = scmp.ne.s32.totalorder %s148, %s149
    %p160 = scmp.eq.s32.totalorder %s16, 0
    %p161 = por %p159, %p160
    %p162 = scmp.ne.s32.totalorder %s148, %s149
    %p163 = scmp.eq.s32.totalorder %s17, 3
    %p164 = por %p162, %p163
    %p166 = scmp.ne.s32.totalorder %s149, %s165
    %p167 = scmp.eq.s32.totalorder %s17, 0
    %p168 = por %p166, %p167
    %p169 = scmp.le.s32.totalorder 1, %s11
    %p170 = scmp.lt.s32.totalorder %s11, 5
    %p171 = pnand %p169, %p170
    %p172 = pneg %p171
    // Predicated region
    $region9: #{conv_out_forward.1} parent=5 // pred_check
      _
    $region10: #{conv_out_forward.1} parent=5 // pred_check_branch
      %174 = sbr.rel (%p171) target = $region12
    $region11: #{conv_out_forward.1} parent=5 // pred_region
      %s175 = ssub.s32 %s11, 1
      // Predicated region
      $region13: #{conv_out_forward.1} parent=11 // pred_check
        %p176 = pneg %p70
      $region14: #{conv_out_forward.1} parent=11 // pred_check_branch
        %178 = sbr.rel (%p176) target = $region16
      $region15: #{conv_out_forward.1} parent=11 // pred_region
        _
      $region16: #{conv_out_forward.1} parent=11 // pred_fallthru
        _
      // Predicated region
      $region17: #{conv_out_forward.1} parent=11 // pred_check
        %p179 = pneg %p91
      $region18: #{conv_out_forward.1} parent=11 // pred_check_branch
        %181 = sbr.rel (%p179) target = $region20
      $region19: #{conv_out_forward.1} parent=11 // pred_region
        _
      $region20: #{conv_out_forward.1} parent=11 // pred_fallthru
        _
      // Predicated region
      $region21: #{conv_out_forward.1} parent=11 // pred_check
        %p182 = pneg %p112
      $region22: #{conv_out_forward.1} parent=11 // pred_check_branch
        %184 = sbr.rel (%p182) target = $region24
      $region23: #{conv_out_forward.1} parent=11 // pred_region
        _
      $region24: #{conv_out_forward.1} parent=11 // pred_fallthru
        _
      // Predicated region
      $region25: #{conv_out_forward.1} parent=11 // pred_check
        %p185 = pneg %p133
      $region26: #{conv_out_forward.1} parent=11 // pred_check_branch
        %187 = sbr.rel (%p185) target = $region28
      $region27: #{conv_out_forward.1} parent=11 // pred_region
        _
      $region28: #{conv_out_forward.1} parent=11 // pred_fallthru
        _
    $region12: #{conv_out_forward.1} parent=5 // pred_fallthru
      _
    %p188 = scmp.lt.s32.totalorder %s11, 4
    // Predicated region
    $region29: #{conv_out_forward.1} parent=5 // pred_check
      %p189 = pneg %p188
    $region30: #{conv_out_forward.1} parent=5 // pred_check_branch
      %191 = sbr.rel (%p189) target = $region32
    $region31: #{conv_out_forward.1} parent=5 // pred_region
      // Predicated region
      $region33: #{conv_out_forward.1} parent=31 // pred_check
        %p192 = pneg %p43
      $region34: #{conv_out_forward.1} parent=31 // pred_check_branch
        %194 = sbr.rel (%p192) target = $region36
      $region35: #{conv_out_forward.1} parent=31 // pred_region
        %p195 = scmp.lt.s32.totalorder %s18, 1
        %s196 = scalar_select %p195, %s18, 1
        %s197 = smul.addr %s196, 54
        %s198 = smul.addr %s197, 4
        %s199 = scalar_lea.vmem %s0, %s198
      $region36: #{conv_out_forward.1} parent=31 // pred_fallthru
        _
    $region32: #{conv_out_forward.1} parent=5 // pred_fallthru
      _
    %p200 = scmp.le.s32.totalorder 1, %s11
    %p201 = scmp.lt.s32.totalorder %s11, 5
    %p202 = pnand %p200, %p201
    %p203 = pneg %p202
    // Predicated region
    $region37: #{conv_out_forward.1} parent=5 // pred_check
      _
    $region38: #{conv_out_forward.1} parent=5 // pred_check_branch
      %205 = sbr.rel (%p202) target = $region40
    $region39: #{conv_out_forward.1} parent=5 // pred_region
      %s206 = ssub.s32 %s11, 1
      %p207 = scmp.lt.s32.totalorder %s20, 1
      %s208 = scalar_select %p207, %s20, 1
      %s209 = smul.addr %s208, 54
      %s210 = smul.addr %s209, 4
      %s211 = scalar_lea.vmem %s0, %s210
      %p212 = pneg %p49
      %p213 = pneg %p46
      %p214 = pneg %p70
      %p215 = pneg %p67
      %p216 = pneg %p91
      %p217 = pneg %p88
      %p218 = pneg %p112
      %p219 = pneg %p109
      %p220 = pneg %p133
      %p221 = pneg %p130
      %p222 = pneg %p161
      %p223 = pneg %p158
      %s224 = smul.u32 24, %s21
      %p225 = scmp.lt.s32.totalorder %s20, 1
      %s226 = scalar_select %p225, %s20, 1
      %p227 = scmp.lt.s32.totalorder %s224, 47
      %s228 = scalar_select %p227, %s224, 47
      %s229 = smul.addr %s226, 48
      %s230 = sadd.s32 %s228, %s229
      %s231 = smul.addr %s230, 8
      %s232 = scalar_lea.vmem %s5, %s231
      %p233 = scmp.lt.s32.totalorder %s20, 1
      %s234 = scalar_select %p233, %s20, 1
      %s235 = smul.addr %s234, 54
      %s236 = smul.addr %s235, 4
      %s237 = scalar_lea.vmem %s0, %s236
      %s238 = smul.u32 24, %s21
      %p239 = scmp.lt.s32.totalorder %s20, 1
      %s240 = scalar_select %p239, %s20, 1
      %p241 = scmp.lt.s32.totalorder %s238, 47
      %s242 = scalar_select %p241, %s238, 47
      %s243 = smul.addr %s240, 48
      %s244 = sadd.s32 %s242, %s243
      %s245 = smul.addr %s244, 8
      %s246 = scalar_lea.vmem %s5, %s245
      %s247 = smul.u32 24, %s21
      %s249 = smul.u32 %s21, 192
      %s250 = sshra.s32 %s249, 3
      %s251 = sand.u32 %s249, 7
      %s252 = smul.addr %s250, 4
      %s253 = scalar_lea.vmem %s237, %s252
      %v254 = vld [vmem:[%s253] sm:$0xf]
      %v255 = vld [vmem:[%s253 + $0x4] sm:$0xf]
      %v256 = vld [vmem:[%s253 + $0x8] sm:$0xf]
      %v257 = vld [vmem:[%s253 + $0xc] sm:$0xf]
      %v258 = vld [vmem:[%s253 + $0x10] sm:$0xf]
      %v259 = vld [vmem:[%s253 + $0x14] sm:$0xf]
      %v260 = vld [vmem:[%s253 + $0x18] sm:$0xf]
      %v261 = vld [vmem:[%s253 + $0x1c] sm:$0xf]
      %v262 = vld [vmem:[%s253 + $0x20] sm:$0xf]
      %v263 = vld [vmem:[%s253 + $0x24] sm:$0xf]
      %v264 = vld [vmem:[%s253 + $0x28] sm:$0xf]
      %v265 = vld [vmem:[%s253 + $0x2c] sm:$0xf]
      %v266 = vld [vmem:[%s253 + $0x30] sm:$0xf]
      %v267 = vld [vmem:[%s253 + $0x34] sm:$0xf]
      %v268 = vld [vmem:[%s253 + $0x38] sm:$0xf]
      %v269 = vld [vmem:[%s253 + $0x3c] sm:$0xf]
      %v270 = vld [vmem:[%s253 + $0x40] sm:$0xf]
      %v271 = vld [vmem:[%s253 + $0x44] sm:$0xf]
      %v272 = vld [vmem:[%s253 + $0x48] sm:$0xf]
      %v273 = vld [vmem:[%s253 + $0x4c] sm:$0xf]
      %v274 = vld [vmem:[%s253 + $0x50] sm:$0xf]
      %v275 = vld [vmem:[%s253 + $0x54] sm:$0xf]
      %v276 = vld [vmem:[%s253 + $0x58] sm:$0xf]
      %v277 = vld [vmem:[%s253 + $0x5c] sm:$0xf]
      %v278 = vld [vmem:[%s1] sm:$0xf]
      %v279 = vld [vmem:[%s1 + $0x4] sm:$0x3]
      %s280 = sadd.s32 %s249, 24
      %s281 = sshra.s32 %s280, 3
      %s282 = sand.u32 %s280, 7
      %s283 = smul.addr %s281, 4
      %s284 = scalar_lea.vmem %s237, %s283
      %v285 = vld [vmem:[%s284] sm:$0xf]
      %v286 = vld [vmem:[%s284 + $0x4] sm:$0xf]
      %v287 = vld [vmem:[%s284 + $0x8] sm:$0xf]
      %v288 = vld [vmem:[%s284 + $0xc] sm:$0xf]
      %v289 = vld [vmem:[%s284 + $0x10] sm:$0xf]
      %v290 = vld [vmem:[%s284 + $0x14] sm:$0xf]
      %v291 = vld [vmem:[%s284 + $0x18] sm:$0xf]
      %v292 = vld [vmem:[%s284 + $0x1c] sm:$0xf]
      %v293 = vld [vmem:[%s284 + $0x20] sm:$0xf]
      %v294 = vld [vmem:[%s284 + $0x24] sm:$0xf]
      %v295 = vld [vmem:[%s284 + $0x28] sm:$0xf]
      %v296 = vld [vmem:[%s284 + $0x2c] sm:$0xf]
      %v297 = vld [vmem:[%s284 + $0x30] sm:$0xf]
      %v298 = vld [vmem:[%s284 + $0x34] sm:$0xf]
      %v299 = vld [vmem:[%s284 + $0x38] sm:$0xf]
      %v300 = vld [vmem:[%s284 + $0x3c] sm:$0xf]
      %v301 = vld [vmem:[%s284 + $0x40] sm:$0xf]
      %v302 = vld [vmem:[%s284 + $0x44] sm:$0xf]
      %v303 = vld [vmem:[%s284 + $0x48] sm:$0xf]
      %v304 = vld [vmem:[%s284 + $0x4c] sm:$0xf]
      %v305 = vld [vmem:[%s284 + $0x50] sm:$0xf]
      %v306 = vld [vmem:[%s284 + $0x54] sm:$0xf]
      %v307 = vld [vmem:[%s284 + $0x58] sm:$0xf]
      %v308 = vld [vmem:[%s284 + $0x5c] sm:$0xf]
      %s309 = scalar_lea.vmem %s1, 8
      %v310 = vld [vmem:[%s309] sm:$0xf]
      %v311 = vld [vmem:[%s309 + $0x4] sm:$0x3]
      %v336 = vunpack.c.l.b16 %v285
      %v337 = vunpack.c.l.b16 %v286
      %v338 = vunpack.c.l.b16 %v287
      %v339 = vunpack.c.l.b16 %v288
      %v340 = vunpack.c.l.b16 %v289
      %v341 = vunpack.c.l.b16 %v290
      %v342 = vunpack.c.l.b16 %v291
      %v343 = vunpack.c.l.b16 %v292
      %v344 = vunpack.c.l.b16 %v293
      %v345 = vunpack.c.l.b16 %v294
      %v346 = vunpack.c.l.b16 %v295
      %v347 = vunpack.c.l.b16 %v296
      %v348 = vunpack.c.l.b16 %v297
      %v349 = vunpack.c.l.b16 %v298
      %v350 = vunpack.c.l.b16 %v299
      %v351 = vunpack.c.l.b16 %v300
      %v352 = vunpack.c.l.b16 %v301
      %v353 = vunpack.c.l.b16 %v302
      %v354 = vunpack.c.l.b16 %v303
      %v355 = vunpack.c.l.b16 %v304
      %v356 = vunpack.c.l.b16 %v305
      %v357 = vunpack.c.l.b16 %v306
      %v358 = vunpack.c.l.b16 %v307
      %v359 = vunpack.c.l.b16 %v308
      %v360 = vpack.c.b16 %v337, %v336
      %v361 = vpack.c.b16 %v339, %v338
      %v362 = vpack.c.b16 %v341, %v340
      %v363 = vpack.c.b16 %v343, %v342
      %v364 = vpack.c.b16 %v345, %v344
      %v365 = vpack.c.b16 %v347, %v346
      %v366 = vpack.c.b16 %v349, %v348
      %v367 = vpack.c.b16 %v351, %v350
      %v368 = vpack.c.b16 %v353, %v352
      %v369 = vpack.c.b16 %v355, %v354
      %v370 = vpack.c.b16 %v357, %v356
      %v371 = vpack.c.b16 %v359, %v358
      %v374 = vunpack.c.l.b16 %v310
      %v375 = vunpack.c.l.b16 %v311
      %v376 = vpack.c.b16 %v375, %v374
      %vm377 = vcmask 97280
      %v379 = vsel %vm377, %v360, 0
      %v382 = vsel %vm377, %v361, 0
      %v385 = vsel %vm377, %v362, 0
      %v388 = vsel %vm377, %v363, 0
      %v391 = vsel %vm377, %v364, 0
      %v394 = vsel %vm377, %v365, 0
      %v397 = vsel %vm377, %v366, 0
      %v400 = vsel %vm377, %v367, 0
      %v403 = vsel %vm377, %v368, 0
      %v406 = vsel %vm377, %v369, 0
      %v409 = vsel %vm377, %v370, 0
      %v412 = vsel %vm377, %v371, 0
      %vm414 = vcmask 1045504
      %v416 = vsel %vm414, %v376, 0
      %418 = vmatprep.subr.bf16.mxu0 0
      %419 = vmatpush1.bf16.msra.mxu0 %v416
      %420 = vmatprep.subr.bf16.mxu0 0
      %421 = vmatpush1.bf16.msra.mxu0 0
      %422 = vmatprep.subr.bf16.mxu0 0
      %423 = vmatpush1.bf16.msra.mxu0 0
      %424 = vmatprep.subr.bf16.mxu0 0
      %425 = vmatpush1.bf16.msra.mxu0 0
      %426 = vmatprep.subr.bf16.mxu0 0
      %427 = vmatpush1.bf16.msra.mxu0 0
      %428 = vmatprep.subr.bf16.mxu0 0
      %429 = vmatpush1.bf16.msra.mxu0 0
      %430 = vmatprep.subr.bf16.mxu0 0
      %431 = vmatpush1.bf16.msra.mxu0 0
      %432 = vmatprep.subr.bf16.mxu0 0
      %433 = vmatpush1.bf16.msra.mxu0 0
      %434 = vmatprep.subr.bf16.mxu0 0
      %435 = vmatpush1.bf16.msra.mxu0 0
      %436 = vmatprep.subr.bf16.mxu0 0
      %437 = vmatpush1.bf16.msra.mxu0 0
      %438 = vmatprep.subr.bf16.mxu0 0
      %439 = vmatpush1.bf16.msra.mxu0 0
      %440 = vmatprep.subr.bf16.mxu0 0
      %441 = vmatpush1.bf16.msra.mxu0 0
      %442 = vmatprep.subr.bf16.mxu0 0
      %443 = vmatpush1.bf16.msra.mxu0 0
      %444 = vmatprep.subr.bf16.mxu0 0
      %445 = vmatpush1.bf16.msra.mxu0 0
      %446 = vmatprep.subr.bf16.mxu0 0
      %447 = vmatpush1.bf16.msra.mxu0 0
      %448 = vmatprep.subr.bf16.mxu0 0
      %449 = vmatpush1.bf16.msra.mxu0 0
      %450 = vmatprep.mubr.bf16.mxu0 0
      %451 = vmatmul.mubr.bf16.gmra.mrb[0].mxu0 %v379
      %v452 = vpop.f32.mrb[0].mxu0
      %v453 = vadd.f32 0.0, %v452
      %v454 = vpop.f32.mrb[0].mxu0
      %v455 = vpop.f32.mrb[0].mxu0
      %v456 = vadd.f32 0.0, %v455
      %v457 = vpop.f32.mrb[0].mxu0
      %458 = vmatprep.mubr.bf16.mxu0 0
      %459 = vmatmul.mubr.bf16.gmra.mrb[0].mxu0 %v382
      %v460 = vpop.f32.mrb[0].mxu0
      %v461 = vadd.f32 0.0, %v460
      %v462 = vpop.f32.mrb[0].mxu0
      %v463 = vpop.f32.mrb[0].mxu0
      %v464 = vadd.f32 0.0, %v463
      %v465 = vpop.f32.mrb[0].mxu0
      %466 = vmatprep.mubr.bf16.mxu0 0
      %467 = vmatmul.mubr.bf16.gmra.mrb[0].mxu0 %v385
      %v468 = vpop.f32.mrb[0].mxu0
      %v469 = vadd.f32 0.0, %v468
      %v470 = vpop.f32.mrb[0].mxu0
      %v471 = vpop.f32.mrb[0].mxu0
      %v472 = vadd.f32 0.0, %v471
      %v473 = vpop.f32.mrb[0].mxu0
      %474 = vmatprep.mubr.bf16.mxu0 0
      %475 = vmatmul.mubr.bf16.gmra.mrb[0].mxu0 %v388
      %v476 = vpop.f32.mrb[0].mxu0
      %v477 = vadd.f32 0.0, %v476
      %v478 = vpop.f32.mrb[0].mxu0
      %v479 = vpop.f32.mrb[0].mxu0
      %v480 = vadd.f32 0.0, %v479
      %v481 = vpop.f32.mrb[0].mxu0
      %482 = vmatprep.mubr.bf16.mxu0 0
      %483 = vmatmul.mubr.bf16.gmra.mrb[0].mxu0 %v391
      %v484 = vpop.f32.mrb[0].mxu0
      %v485 = vadd.f32 0.0, %v484
      %v486 = vpop.f32.mrb[0].mxu0
      %v487 = vpop.f32.mrb[0].mxu0
      %v488 = vadd.f32 0.0, %v487
      %v489 = vpop.f32.mrb[0].mxu0
      %490 = vmatprep.mubr.bf16.mxu0 0
      %491 = vmatmul.mubr.bf16.gmra.mrb[0].mxu0 %v394
      %v492 = vpop.f32.mrb[0].mxu0
      %v493 = vadd.f32 0.0, %v492
      %v494 = vpop.f32.mrb[0].mxu0
      %v495 = vpop.f32.mrb[0].mxu0
      %v496 = vadd.f32 0.0, %v495
      %v497 = vpop.f32.mrb[0].mxu0
      %498 = vmatprep.mubr.bf16.mxu0 0
      %499 = vmatmul.mubr.bf16.gmra.mrb[0].mxu0 %v397
      %v500 = vpop.f32.mrb[0].mxu0
      %v501 = vadd.f32 0.0, %v500
      %v502 = vpop.f32.mrb[0].mxu0
      %v503 = vpop.f32.mrb[0].mxu0
      %v504 = vadd.f32 0.0, %v503
      %v505 = vpop.f32.mrb[0].mxu0
      %506 = vmatprep.mubr.bf16.mxu0 0
      %507 = vmatmul.mubr.bf16.gmra.mrb[0].mxu0 %v400
      %v508 = vpop.f32.mrb[0].mxu0
      %v509 = vadd.f32 0.0, %v508
      %v510 = vpop.f32.mrb[0].mxu0
      %v511 = vpop.f32.mrb[0].mxu0
      %v512 = vadd.f32 0.0, %v511
      %v513 = vpop.f32.mrb[0].mxu0
      %514 = vmatprep.mubr.bf16.mxu0 0
      %515 = vmatmul.mubr.bf16.gmra.mrb[0].mxu0 %v403
      %v516 = vpop.f32.mrb[0].mxu0
      %v517 = vadd.f32 0.0, %v516
      %v518 = vpop.f32.mrb[0].mxu0
      %v519 = vpop.f32.mrb[0].mxu0
      %v520 = vadd.f32 0.0, %v519
      %v521 = vpop.f32.mrb[0].mxu0
      %522 = vmatprep.mubr.bf16.mxu0 0
      %523 = vmatmul.mubr.bf16.gmra.mrb[0].mxu0 %v406
      %v524 = vpop.f32.mrb[0].mxu0
      %v525 = vadd.f32 0.0, %v524
      %v526 = vpop.f32.mrb[0].mxu0
      %v527 = vpop.f32.mrb[0].mxu0
      %v528 = vadd.f32 0.0, %v527
      %v529 = vpop.f32.mrb[0].mxu0
      %530 = vmatprep.mubr.bf16.mxu0 0
      %531 = vmatmul.mubr.bf16.gmra.mrb[0].mxu0 %v409
      %v532 = vpop.f32.mrb[0].mxu0
      %v533 = vadd.f32 0.0, %v532
      %v534 = vpop.f32.mrb[0].mxu0
      %v535 = vpop.f32.mrb[0].mxu0
      %v536 = vadd.f32 0.0, %v535
      %v537 = vpop.f32.mrb[0].mxu0
      %538 = vmatprep.mubr.bf16.mxu0 0
      %539 = vmatmul.mubr.bf16.gmra.mrb[0].mxu0 %v412
      %v540 = vpop.f32.mrb[0].mxu0
      %v541 = vadd.f32 0.0, %v540
      %v542 = vpop.f32.mrb[0].mxu0
      %v543 = vpop.f32.mrb[0].mxu0
      %v544 = vadd.f32 0.0, %v543
      %v545 = vpop.f32.mrb[0].mxu0
      %546 = vdwg.mxu0
      %v571 = vunpack.c.l.b16 %v254
      %v572 = vunpack.c.l.b16 %v255
      %v573 = vunpack.c.l.b16 %v256
      %v574 = vunpack.c.l.b16 %v257
      %v575 = vunpack.c.l.b16 %v258
      %v576 = vunpack.c.l.b16 %v259
      %v577 = vunpack.c.l.b16 %v260
      %v578 = vunpack.c.l.b16 %v261
      %v579 = vunpack.c.l.b16 %v262
      %v580 = vunpack.c.l.b16 %v263
      %v581 = vunpack.c.l.b16 %v264
      %v582 = vunpack.c.l.b16 %v265
      %v583 = vunpack.c.l.b16 %v266
      %v584 = vunpack.c.l.b16 %v267
      %v585 = vunpack.c.l.b16 %v268
      %v586 = vunpack.c.l.b16 %v269
      %v587 = vunpack.c.l.b16 %v270
      %v588 = vunpack.c.l.b16 %v271
      %v589 = vunpack.c.l.b16 %v272
      %v590 = vunpack.c.l.b16 %v273
      %v591 = vunpack.c.l.b16 %v274
      %v592 = vunpack.c.l.b16 %v275
      %v593 = vunpack.c.l.b16 %v276
      %v594 = vunpack.c.l.b16 %v277
      %v595 = vpack.c.b16 %v572, %v571
      %v596 = vpack.c.b16 %v574, %v573
      %v597 = vpack.c.b16 %v576, %v575
      %v598 = vpack.c.b16 %v578, %v577
      %v599 = vpack.c.b16 %v580, %v579
      %v600 = vpack.c.b16 %v582, %v581
      %v601 = vpack.c.b16 %v584, %v583
      %v602 = vpack.c.b16 %v586, %v585
      %v603 = vpack.c.b16 %v588, %v587
      %v604 = vpack.c.b16 %v590, %v589
      %v605 = vpack.c.b16 %v592, %v591
      %v606 = vpack.c.b16 %v594, %v593
      %v609 = vunpack.c.l.b16 %v278
      %v610 = vunpack.c.l.b16 %v279
      %v611 = vpack.c.b16 %v610, %v609
      %v613 = vsel %vm377, %v595, 0
      %v616 = vsel %vm377, %v596, 0
      %v619 = vsel %vm377, %v597, 0
      %v622 = vsel %vm377, %v598, 0
      %v625 = vsel %vm377, %v599, 0
      %v628 = vsel %vm377, %v600, 0
      %v631 = vsel %vm377, %v601, 0
      %v634 = vsel %vm377, %v602, 0
      %v637 = vsel %vm377, %v603, 0
      %v640 = vsel %vm377, %v604, 0
      %v643 = vsel %vm377, %v605, 0
      %v646 = vsel %vm377, %v606, 0
      %v649 = vsel %vm414, %v611, 0
      %651 = vmatprep.subr.bf16.mxu0 0
      %652 = vmatpush1.bf16.msra.mxu0 %v649
      %653 = vmatprep.subr.bf16.mxu0 0
      %654 = vmatpush1.bf16.msra.mxu0 0
      %655 = vmatprep.subr.bf16.mxu0 0
      %656 = vmatpush1.bf16.msra.mxu0 0
      %657 = vmatprep.subr.bf16.mxu0 0
      %658 = vmatpush1.bf16.msra.mxu0 0
      %659 = vmatprep.subr.bf16.mxu0 0
      %660 = vmatpush1.bf16.msra.mxu0 0
      %661 = vmatprep.subr.bf16.mxu0 0
      %662 = vmatpush1.bf16.msra.mxu0 0
      %663 = vmatprep.subr.bf16.mxu0 0
      %664 = vmatpush1.bf16.msra.mxu0 0
      %665 = vmatprep.subr.bf16.mxu0 0
      %666 = vmatpush1.bf16.msra.mxu0 0
      %667 = vmatprep.subr.bf16.mxu0 0
      %668 = vmatpush1.bf16.msra.mxu0 0
      %669 = vmatprep.subr.bf16.mxu0 0
      %670 = vmatpush1.bf16.msra.mxu0 0
      %671 = vmatprep.subr.bf16.mxu0 0
      %672 = vmatpush1.bf16.msra.mxu0 0
      %673 = vmatprep.subr.bf16.mxu0 0
      %674 = vmatpush1.bf16.msra.mxu0 0
      %675 = vmatprep.subr.bf16.mxu0 0
      %676 = vmatpush1.bf16.msra.mxu0 0
      %677 = vmatprep.subr.bf16.mxu0 0
      %678 = vmatpush1.bf16.msra.mxu0 0
      %679 = vmatprep.subr.bf16.mxu0 0
      %680 = vmatpush1.bf16.msra.mxu0 0
      %681 = vmatprep.subr.bf16.mxu0 0
      %682 = vmatpush1.bf16.msra.mxu0 0
      %683 = vmatprep.mubr.bf16.mxu0 0
      %684 = vmatmul.mubr.bf16.gmra.mrb[0].mxu0 %v613
      %v685 = vpop.f32.mrb[0].mxu0
      %v686 = vadd.f32 %v453, %v685
      %v687 = vpop.f32.mrb[0].mxu0
      %v688 = vpop.f32.mrb[0].mxu0
      %v689 = vadd.f32 %v456, %v688
      %v690 = vpop.f32.mrb[0].mxu0
      %691 = vmatprep.mubr.bf16.mxu0 0
      %692 = vmatmul.mubr.bf16.gmra.mrb[0].mxu0 %v616
      %v693 = vpop.f32.mrb[0].mxu0
      %v694 = vadd.f32 %v461, %v693
      %v695 = vpop.f32.mrb[0].mxu0
      %v696 = vpop.f32.mrb[0].mxu0
      %v697 = vadd.f32 %v464, %v696
      %v698 = vpop.f32.mrb[0].mxu0
      %699 = vmatprep.mubr.bf16.mxu0 0
      %700 = vmatmul.mubr.bf16.gmra.mrb[0].mxu0 %v619
      %v701 = vpop.f32.mrb[0].mxu0
      %v702 = vadd.f32 %v469, %v701
      %v703 = vpop.f32.mrb[0].mxu0
      %v704 = vpop.f32.mrb[0].mxu0
      %v705 = vadd.f32 %v472, %v704
      %v706 = vpop.f32.mrb[0].mxu0
      %707 = vmatprep.mubr.bf16.mxu0 0
      %708 = vmatmul.mubr.bf16.gmra.mrb[0].mxu0 %v622
      %v709 = vpop.f32.mrb[0].mxu0
      %v710 = vadd.f32 %v477, %v709
      %v711 = vpop.f32.mrb[0].mxu0
      %v712 = vpop.f32.mrb[0].mxu0
      %v713 = vadd.f32 %v480, %v712
      %v714 = vpop.f32.mrb[0].mxu0
      %715 = vmatprep.mubr.bf16.mxu0 0
      %716 = vmatmul.mubr.bf16.gmra.mrb[0].mxu0 %v625
      %v717 = vpop.f32.mrb[0].mxu0
      %v718 = vadd.f32 %v485, %v717
      %v719 = vpop.f32.mrb[0].mxu0
      %v720 = vpop.f32.mrb[0].mxu0
      %v721 = vadd.f32 %v488, %v720
      %v722 = vpop.f32.mrb[0].mxu0
      %723 = vmatprep.mubr.bf16.mxu0 0
      %724 = vmatmul.mubr.bf16.gmra.mrb[0].mxu0 %v628
      %v725 = vpop.f32.mrb[0].mxu0
      %v726 = vadd.f32 %v493, %v725
      %v727 = vpop.f32.mrb[0].mxu0
      %v728 = vpop.f32.mrb[0].mxu0
      %v729 = vadd.f32 %v496, %v728
      %v730 = vpop.f32.mrb[0].mxu0
      %731 = vmatprep.mubr.bf16.mxu0 0
      %732 = vmatmul.mubr.bf16.gmra.mrb[0].mxu0 %v631
      %v733 = vpop.f32.mrb[0].mxu0
      %v734 = vadd.f32 %v501, %v733
      %v735 = vpop.f32.mrb[0].mxu0
      %v736 = vpop.f32.mrb[0].mxu0
      %v737 = vadd.f32 %v504, %v736
      %v738 = vpop.f32.mrb[0].mxu0
      %739 = vmatprep.mubr.bf16.mxu0 0
      %740 = vmatmul.mubr.bf16.gmra.mrb[0].mxu0 %v634
      %v741 = vpop.f32.mrb[0].mxu0
      %v742 = vadd.f32 %v509, %v741
      %v743 = vpop.f32.mrb[0].mxu0
      %v744 = vpop.f32.mrb[0].mxu0
      %v745 = vadd.f32 %v512, %v744
      %v746 = vpop.f32.mrb[0].mxu0
      %747 = vmatprep.mubr.bf16.mxu0 0
      %748 = vmatmul.mubr.bf16.gmra.mrb[0].mxu0 %v637
      %v749 = vpop.f32.mrb[0].mxu0
      %v750 = vadd.f32 %v517, %v749
      %v751 = vpop.f32.mrb[0].mxu0
      %v752 = vpop.f32.mrb[0].mxu0
      %v753 = vadd.f32 %v520, %v752
      %v754 = vpop.f32.mrb[0].mxu0
      %755 = vmatprep.mubr.bf16.mxu0 0
      %756 = vmatmul.mubr.bf16.gmra.mrb[0].mxu0 %v640
      %v757 = vpop.f32.mrb[0].mxu0
      %v758 = vadd.f32 %v525, %v757
      %v759 = vpop.f32.mrb[0].mxu0
      %v760 = vpop.f32.mrb[0].mxu0
      %v761 = vadd.f32 %v528, %v760
      %v762 = vpop.f32.mrb[0].mxu0
      %763 = vmatprep.mubr.bf16.mxu0 0
      %764 = vmatmul.mubr.bf16.gmra.mrb[0].mxu0 %v643
      %v765 = vpop.f32.mrb[0].mxu0
      %v766 = vadd.f32 %v533, %v765
      %v767 = vpop.f32.mrb[0].mxu0
      %v768 = vpop.f32.mrb[0].mxu0
      %v769 = vadd.f32 %v536, %v768
      %v770 = vpop.f32.mrb[0].mxu0
      %771 = vmatprep.mubr.bf16.mxu0 0
      %772 = vmatmul.mubr.bf16.gmra.mrb[0].mxu0 %v646
      %v773 = vpop.f32.mrb[0].mxu0
      %v774 = vadd.f32 %v541, %v773
      %v775 = vpop.f32.mrb[0].mxu0
      %v776 = vpop.f32.mrb[0].mxu0
      %v777 = vadd.f32 %v544, %v776
      %v778 = vpop.f32.mrb[0].mxu0
      %779 = vdwg.mxu0
      %s780 = sadd.s32 %s249, 48
      %s781 = sshra.s32 %s780, 3
      %s782 = sand.u32 %s780, 7
      %s783 = smul.addr %s781, 4
      %s784 = scalar_lea.vmem %s237, %s783
      %v785 = vld [vmem:[%s784] sm:$0xf]
      %v786 = vld [vmem:[%s784 + $0x4] sm:$0xf]
      %v787 = vld [vmem:[%s784 + $0x8] sm:$0xf]
      %v788 = vld [vmem:[%s784 + $0xc] sm:$0xf]
      %v789 = vld [vmem:[%s784 + $0x10] sm:$0xf]
      %v790 = vld [vmem:[%s784 + $0x14] sm:$0xf]
      %v791 = vld [vmem:[%s784 + $0x18] sm:$0xf]
      %v792 = vld [vmem:[%s784 + $0x1c] sm:$0xf]
      %v793 = vld [vmem:[%s784 + $0x20] sm:$0xf]
      %v794 = vld [vmem:[%s784 + $0x24] sm:$0xf]
      %v795 = vld [vmem:[%s784 + $0x28] sm:$0xf]
      %v796 = vld [vmem:[%s784 + $0x2c] sm:$0xf]
      %v797 = vld [vmem:[%s784 + $0x30] sm:$0xf]
      %v798 = vld [vmem:[%s784 + $0x34] sm:$0xf]
      %v799 = vld [vmem:[%s784 + $0x38] sm:$0xf]
      %v800 = vld [vmem:[%s784 + $0x3c] sm:$0xf]
      %v801 = vld [vmem:[%s784 + $0x40] sm:$0xf]
      %v802 = vld [vmem:[%s784 + $0x44] sm:$0xf]
      %v803 = vld [vmem:[%s784 + $0x48] sm:$0xf]
      %v804 = vld [vmem:[%s784 + $0x4c] sm:$0xf]
      %v805 = vld [vmem:[%s784 + $0x50] sm:$0xf]
      %v806 = vld [vmem:[%s784 + $0x54] sm:$0xf]
      %v807 = vld [vmem:[%s784 + $0x58] sm:$0xf]
      %v808 = vld [vmem:[%s784 + $0x5c] sm:$0xf]
      %s809 = scalar_lea.vmem %s1, 16
      %v810 = vld [vmem:[%s809] sm:$0xf]
      %v811 = vld [vmem:[%s809 + $0x4] sm:$0x3]
      %v836 = vunpack.c.l.b16 %v785
      %v837 = vunpack.c.l.b16 %v786
      %v838 = vunpack.c.l.b16 %v787
      %v839 = vunpack.c.l.b16 %v788
      %v840 = vunpack.c.l.b16 %v789
      %v841 = vunpack.c.l.b16 %v790
      %v842 = vunpack.c.l.b16 %v791
      %v843 = vunpack.c.l.b16 %v792
      %v844 = vunpack.c.l.b16 %v793
      %v845 = vunpack.c.l.b16 %v794
      %v846 = vunpack.c.l.b16 %v795
      %v847 = vunpack.c.l.b16 %v796
      %v848 = vunpack.c.l.b16 %v797
      %v849 = vunpack.c.l.b16 %v798
      %v850 = vunpack.c.l.b16 %v799
      %v851 = vunpack.c.l.b16 %v800
      %v852 = vunpack.c.l.b16 %v801
      %v853 = vunpack.c.l.b16 %v802
      %v854 = vunpack.c.l.b16 %v803
      %v855 = vunpack.c.l.b16 %v804
      %v856 = vunpack.c.l.b16 %v805
      %v857 = vunpack.c.l.b16 %v806
      %v858 = vunpack.c.l.b16 %v807
      %v859 = vunpack.c.l.b16 %v808
      %v860 = vpack.c.b16 %v837, %v836
      %v861 = vpack.c.b16 %v839, %v838
      %v862 = vpack.c.b16 %v841, %v840
      %v863 = vpack.c.b16 %v843, %v842
      %v864 = vpack.c.b16 %v845, %v844
      %v865 = vpack.c.b16 %v847, %v846
      %v866 = vpack.c.b16 %v849, %v848
      %v867 = vpack.c.b16 %v851, %v850
      %v868 = vpack.c.b16 %v853, %v852
      %v869 = vpack.c.b16 %v855, %v854
      %v870 = vpack.c.b16 %v857, %v856
      %v871 = vpack.c.b16 %v859, %v858
      %v874 = vunpack.c.l.b16 %v810
      %v875 = vunpack.c.l.b16 %v811
      %v876 = vpack.c.b16 %v875, %v874
      %v878 = vsel %vm377, %v860, 0
      %v881 = vsel %vm377, %v861, 0
      %v884 = vsel %vm377, %v862, 0
      %v887 = vsel %vm377, %v863, 0
      %v890 = vsel %vm377, %v864, 0
      %v893 = vsel %vm377, %v865, 0
      %v896 = vsel %vm377, %v866, 0
      %v899 = vsel %vm377, %v867, 0
      %v902 = vsel %vm377, %v868, 0
      %v905 = vsel %vm377, %v869, 0
      %v908 = vsel %vm377, %v870, 0
      %v911 = vsel %vm377, %v871, 0
      %v914 = vsel %vm414, %v876, 0
      %916 = vmatprep.subr.bf16.mxu0 0
      %917 = vmatpush1.bf16.msra.mxu0 %v914
      %918 = vmatprep.subr.bf16.mxu0 0
      %919 = vmatpush1.bf16.msra.mxu0 0
      %920 = vmatprep.subr.bf16.mxu0 0
      %921 = vmatpush1.bf16.msra.mxu0 0
      %922 = vmatprep.subr.bf16.mxu0 0
      %923 = vmatpush1.bf16.msra.mxu0 0
      %924 = vmatprep.subr.bf16.mxu0 0
      %925 = vmatpush1.bf16.msra.mxu0 0
      %926 = vmatprep.subr.bf16.mxu0 0
      %927 = vmatpush1.bf16.msra.mxu0 0
      %928 = vmatprep.subr.bf16.mxu0 0
      %929 = vmatpush1.bf16.msra.mxu0 0
      %930 = vmatprep.subr.bf16.mxu0 0
      %931 = vmatpush1.bf16.msra.mxu0 0
      %932 = vmatprep.subr.bf16.mxu0 0
      %933 = vmatpush1.bf16.msra.mxu0 0
      %934 = vmatprep.subr.bf16.mxu0 0
      %935 = vmatpush1.bf16.msra.mxu0 0
      %936 = vmatprep.subr.bf16.mxu0 0
      %937 = vmatpush1.bf16.msra.mxu0 0
      %938 = vmatprep.subr.bf16.mxu0 0
      %939 = vmatpush1.bf16.msra.mxu0 0
      %940 = vmatprep.subr.bf16.mxu0 0
      %941 = vmatpush1.bf16.msra.mxu0 0
      %942 = vmatprep.subr.bf16.mxu0 0
      %943 = vmatpush1.bf16.msra.mxu0 0
      %944 = vmatprep.subr.bf16.mxu0 0
      %945 = vmatpush1.bf16.msra.mxu0 0
      %946 = vmatprep.subr.bf16.mxu0 0
      %947 = vmatpush1.bf16.msra.mxu0 0
      %948 = vmatprep.mubr.bf16.mxu0 0
      %949 = vmatmul.mubr.bf16.gmra.mrb[0].mxu0 %v878
      %v950 = vpop.f32.mrb[0].mxu0
      %v951 = vadd.f32 0.0, %v950
      %v952 = vpop.f32.mrb[0].mxu0
      %v953 = vpop.f32.mrb[0].mxu0
      %v954 = vadd.f32 0.0, %v953
      %v955 = vpop.f32.mrb[0].mxu0
      %956 = vmatprep.mubr.bf16.mxu0 0
      %957 = vmatmul.mubr.bf16.gmra.mrb[0].mxu0 %v881
      %v958 = vpop.f32.mrb[0].mxu0
      %v959 = vadd.f32 0.0, %v958
      %v960 = vpop.f32.mrb[0].mxu0
      %v961 = vpop.f32.mrb[0].mxu0
      %v962 = vadd.f32 0.0, %v961
      %v963 = vpop.f32.mrb[0].mxu0
      %964 = vmatprep.mubr.bf16.mxu0 0
      %965 = vmatmul.mubr.bf16.gmra.mrb[0].mxu0 %v884
      %v966 = vpop.f32.mrb[0].mxu0
      %v967 = vadd.f32 0.0, %v966
      %v968 = vpop.f32.mrb[0].mxu0
      %v969 = vpop.f32.mrb[0].mxu0
      %v970 = vadd.f32 0.0, %v969
      %v971 = vpop.f32.mrb[0].mxu0
      %972 = vmatprep.mubr.bf16.mxu0 0
      %973 = vmatmul.mubr.bf16.gmra.mrb[0].mxu0 %v887
      %v974 = vpop.f32.mrb[0].mxu0
      %v975 = vadd.f32 0.0, %v974
      %v976 = vpop.f32.mrb[0].mxu0
      %v977 = vpop.f32.mrb[0].mxu0
      %v978 = vadd.f32 0.0, %v977
      %v979 = vpop.f32.mrb[0].mxu0
      %980 = vmatprep.mubr.bf16.mxu0 0
      %981 = vmatmul.mubr.bf16.gmra.mrb[0].mxu0 %v890
      %v982 = vpop.f32.mrb[0].mxu0
      %v983 = vadd.f32 0.0, %v982
      %v984 = vpop.f32.mrb[0].mxu0
      %v985 = vpop.f32.mrb[0].mxu0
      %v986 = vadd.f32 0.0, %v985
      %v987 = vpop.f32.mrb[0].mxu0
      %988 = vmatprep.mubr.bf16.mxu0 0
      %989 = vmatmul.mubr.bf16.gmra.mrb[0].mxu0 %v893
      %v990 = vpop.f32.mrb[0].mxu0
      %v991 = vadd.f32 0.0, %v990
      %v992 = vpop.f32.mrb[0].mxu0
      %v993 = vpop.f32.mrb[0].mxu0
      %v994 = vadd.f32 0.0, %v993
      %v995 = vpop.f32.mrb[0].mxu0
      %996 = vmatprep.mubr.bf16.mxu0 0
      %997 = vmatmul.mubr.bf16.gmra.mrb[0].mxu0 %v896
      %v998 = vpop.f32.mrb[0].mxu0
      %v999 = vadd.f32 0.0, %v998
      %v1000 = vpop.f32.mrb[0].mxu0
      %v1001 = vpop.f32.mrb[0].mxu0
      %v1002 = vadd.f32 0.0, %v1001
      %v1003 = vpop.f32.mrb[0].mxu0
      %1004 = vmatprep.mubr.bf16.mxu0 0
      %1005 = vmatmul.mubr.bf16.gmra.mrb[0].mxu0 %v899
      %v1006 = vpop.f32.mrb[0].mxu0
      %v1007 = vadd.f32 0.0, %v1006
      %v1008 = vpop.f32.mrb[0].mxu0
      %v1009 = vpop.f32.mrb[0].mxu0
      %v1010 = vadd.f32 0.0, %v1009
      %v1011 = vpop.f32.mrb[0].mxu0
      %1012 = vmatprep.mubr.bf16.mxu0 0
      %1013 = vmatmul.mubr.bf16.gmra.mrb[0].mxu0 %v902
      %v1014 = vpop.f32.mrb[0].mxu0
      %v1015 = vadd.f32 0.0, %v1014
      %v1016 = vpop.f32.mrb[0].mxu0
      %v1017 = vpop.f32.mrb[0].mxu0
      %v1018 = vadd.f32 0.0, %v1017
      %v1019 = vpop.f32.mrb[0].mxu0
      %1020 = vmatprep.mubr.bf16.mxu0 0
      %1021 = vmatmul.mubr.bf16.gmra.mrb[0].mxu0 %v905
      %v1022 = vpop.f32.mrb[0].mxu0
      %v1023 = vadd.f32 0.0, %v1022
      %v1024 = vpop.f32.mrb[0].mxu0
      %v1025 = vpop.f32.mrb[0].mxu0
      %v1026 = vadd.f32 0.0, %v1025
      %v1027 = vpop.f32.mrb[0].mxu0
      %1028 = vmatprep.mubr.bf16.mxu0 0
      %1029 = vmatmul.mubr.bf16.gmra.mrb[0].mxu0 %v908
      %v1030 = vpop.f32.mrb[0].mxu0
      %v1031 = vadd.f32 0.0, %v1030
      %v1032 = vpop.f32.mrb[0].mxu0
      %v1033 = vpop.f32.mrb[0].mxu0
      %v1034 = vadd.f32 0.0, %v1033
      %v1035 = vpop.f32.mrb[0].mxu0
      %1036 = vmatprep.mubr.bf16.mxu0 0
      %1037 = vmatmul.mubr.bf16.gmra.mrb[0].mxu0 %v911
      %v1038 = vpop.f32.mrb[0].mxu0
      %v1039 = vadd.f32 0.0, %v1038
      %v1040 = vpop.f32.mrb[0].mxu0
      %v1041 = vpop.f32.mrb[0].mxu0
      %v1042 = vadd.f32 0.0, %v1041
      %v1043 = vpop.f32.mrb[0].mxu0
      %1044 = vdwg.mxu0
      %v1045 = vadd.f32 %v686, %v951
      %v1046 = vadd.f32 %v689, %v954
      %v1047 = vadd.f32 %v694, %v959
      %v1048 = vadd.f32 %v697, %v962
      %v1049 = vadd.f32 %v702, %v967
      %v1050 = vadd.f32 %v705, %v970
      %v1051 = vadd.f32 %v710, %v975
      %v1052 = vadd.f32 %v713, %v978
      %v1053 = vadd.f32 %v718, %v983
      %v1054 = vadd.f32 %v721, %v986
      %v1055 = vadd.f32 %v726, %v991
      %v1056 = vadd.f32 %v729, %v994
      %v1057 = vadd.f32 %v734, %v999
      %v1058 = vadd.f32 %v737, %v1002
      %v1059 = vadd.f32 %v742, %v1007
      %v1060 = vadd.f32 %v745, %v1010
      %v1061 = vadd.f32 %v750, %v1015
      %v1062 = vadd.f32 %v753, %v1018
      %v1063 = vadd.f32 %v758, %v1023
      %v1064 = vadd.f32 %v761, %v1026
      %v1065 = vadd.f32 %v766, %v1031
      %v1066 = vadd.f32 %v769, %v1034
      %v1067 = vadd.f32 %v774, %v1039
      %v1068 = vadd.f32 %v777, %v1042
      %v1069 = vld [vmem:[%s2] sm:$0x1]
      %v1071 = vlaneseq
      %v1072 = vshrl.u32 %v1071, 7
      %v1073 = vsub.s32 0, %v1072
      %v1074 = vrot.slane %v1069, %v1073
      %v1076 = vadd.f32 %v1045, %v1074
      %v1077 = vadd.f32 %v1046, %v1074
      %v1078 = vadd.f32 %v1047, %v1074
      %v1079 = vadd.f32 %v1048, %v1074
      %v1080 = vadd.f32 %v1049, %v1074
      %v1081 = vadd.f32 %v1050, %v1074
      %v1082 = vadd.f32 %v1051, %v1074
      %v1083 = vadd.f32 %v1052, %v1074
      %v1084 = vadd.f32 %v1053, %v1074
      %v1085 = vadd.f32 %v1054, %v1074
      %v1086 = vadd.f32 %v1055, %v1074
      %v1087 = vadd.f32 %v1056, %v1074
      %v1088 = vadd.f32 %v1057, %v1074
      %v1089 = vadd.f32 %v1058, %v1074
      %v1090 = vadd.f32 %v1059, %v1074
      %v1091 = vadd.f32 %v1060, %v1074
      %v1092 = vadd.f32 %v1061, %v1074
      %v1093 = vadd.f32 %v1062, %v1074
      %v1094 = vadd.f32 %v1063, %v1074
      %v1095 = vadd.f32 %v1064, %v1074
      %v1096 = vadd.f32 %v1065, %v1074
      %v1097 = vadd.f32 %v1066, %v1074
      %v1098 = vadd.f32 %v1067, %v1074
      %v1099 = vadd.f32 %v1068, %v1074
      %v1100 = vmul.f32 %v1076, 0.1
      %v1101 = vmul.f32 %v1077, 0.1
      %v1102 = vmul.f32 %v1078, 0.1
      %v1103 = vmul.f32 %v1079, 0.1
      %v1104 = vmul.f32 %v1080, 0.1
      %v1105 = vmul.f32 %v1081, 0.1
      %v1106 = vmul.f32 %v1082, 0.1
      %v1107 = vmul.f32 %v1083, 0.1
      %v1108 = vmul.f32 %v1084, 0.1
      %v1109 = vmul.f32 %v1085, 0.1
      %v1110 = vmul.f32 %v1086, 0.1
      %v1111 = vmul.f32 %v1087, 0.1
      %v1112 = vmul.f32 %v1088, 0.1
      %v1113 = vmul.f32 %v1089, 0.1
      %v1114 = vmul.f32 %v1090, 0.1
      %v1115 = vmul.f32 %v1091, 0.1
      %v1116 = vmul.f32 %v1092, 0.1
      %v1117 = vmul.f32 %v1093, 0.1
      %v1118 = vmul.f32 %v1094, 0.1
      %v1119 = vmul.f32 %v1095, 0.1
      %v1120 = vmul.f32 %v1096, 0.1
      %v1121 = vmul.f32 %v1097, 0.1
      %v1122 = vmul.f32 %v1098, 0.1
      %v1123 = vmul.f32 %v1099, 0.1
      %v1124 = vmax.f32 %v1076, %v1100
      %v1125 = vmax.f32 %v1077, %v1101
      %v1126 = vmax.f32 %v1078, %v1102
      %v1127 = vmax.f32 %v1079, %v1103
      %v1128 = vmax.f32 %v1080, %v1104
      %v1129 = vmax.f32 %v1081, %v1105
      %v1130 = vmax.f32 %v1082, %v1106
      %v1131 = vmax.f32 %v1083, %v1107
      %v1132 = vmax.f32 %v1084, %v1108
      %v1133 = vmax.f32 %v1085, %v1109
      %v1134 = vmax.f32 %v1086, %v1110
      %v1135 = vmax.f32 %v1087, %v1111
      %v1136 = vmax.f32 %v1088, %v1112
      %v1137 = vmax.f32 %v1089, %v1113
      %v1138 = vmax.f32 %v1090, %v1114
      %v1139 = vmax.f32 %v1091, %v1115
      %v1140 = vmax.f32 %v1092, %v1116
      %v1141 = vmax.f32 %v1093, %v1117
      %v1142 = vmax.f32 %v1094, %v1118
      %v1143 = vmax.f32 %v1095, %v1119
      %v1144 = vmax.f32 %v1096, %v1120
      %v1145 = vmax.f32 %v1097, %v1121
      %v1146 = vmax.f32 %v1098, %v1122
      %v1147 = vmax.f32 %v1099, %v1123
      %v1148 = vpack.c.bf16 %v1125, %v1124
      %v1149 = vpack.c.bf16 %v1127, %v1126
      %v1150 = vpack.c.bf16 %v1129, %v1128
      %v1151 = vpack.c.bf16 %v1131, %v1130
      %v1152 = vpack.c.bf16 %v1133, %v1132
      %v1153 = vpack.c.bf16 %v1135, %v1134
      %v1154 = vpack.c.bf16 %v1137, %v1136
      %v1155 = vpack.c.bf16 %v1139, %v1138
      %v1156 = vpack.c.bf16 %v1141, %v1140
      %v1157 = vpack.c.bf16 %v1143, %v1142
      %v1158 = vpack.c.bf16 %v1145, %v1144
      %v1159 = vpack.c.bf16 %v1147, %v1146
      %v1160 = vld [vmem:[%s3] sm:$0xf]
      %v1161 = vld [vmem:[%s3 + $0x4] sm:$0xf]
      %v1162 = vld [vmem:[%s3 + $0x8] sm:$0xf]
      %v1163 = vld [vmem:[%s3 + $0xc] sm:$0xf]
      %v1164 = vld [vmem:[%s3 + $0x10] sm:$0xf]
      %v1165 = vld [vmem:[%s3 + $0x14] sm:$0xf]
      %v1166 = vld [vmem:[%s3 + $0x18] sm:$0xf]
      %v1167 = vld [vmem:[%s3 + $0x1c] sm:$0xf]
      %v1168 = vld [vmem:[%s3 + $0x20] sm:$0xf]
      %v1169 = vld [vmem:[%s3 + $0x24] sm:$0xf]
      %v1170 = vld [vmem:[%s3 + $0x28] sm:$0xf]
      %v1171 = vld [vmem:[%s3 + $0x2c] sm:$0xf]
      %v1172 = vld [vmem:[%s3 + $0x30] sm:$0xf]
      %v1173 = vld [vmem:[%s3 + $0x34] sm:$0xf]
      %v1174 = vld [vmem:[%s3 + $0x38] sm:$0xf]
      %v1175 = vld [vmem:[%s3 + $0x3c] sm:$0xf]
      %v1176 = vld [vmem:[%s4] sm:$0x1]
      %v1178 = vlaneseq
      %v1179 = vshrl.u32 %v1178, 7
      %v1180 = vsub.s32 0, %v1179
      %v1181 = vrot.slane %v1176, %v1180
      %v1199 = vunpack.c.l.b16 %v1160
      %v1200 = vunpack.c.l.b16 %v1161
      %v1201 = vunpack.c.l.b16 %v1162
      %v1202 = vunpack.c.l.b16 %v1163
      %v1203 = vunpack.c.l.b16 %v1164
      %v1204 = vunpack.c.l.b16 %v1165
      %v1205 = vunpack.c.l.b16 %v1166
      %v1206 = vunpack.c.l.b16 %v1167
      %v1207 = vunpack.c.l.b16 %v1168
      %v1208 = vunpack.c.l.b16 %v1169
      %v1209 = vunpack.c.l.b16 %v1170
      %v1210 = vunpack.c.l.b16 %v1171
      %v1211 = vunpack.c.l.b16 %v1172
      %v1212 = vunpack.c.l.b16 %v1173
      %v1213 = vunpack.c.l.b16 %v1174
      %v1214 = vunpack.c.l.b16 %v1175
      %v1215 = vpack.c.b16 %v1200, %v1199
      %v1216 = vpack.c.b16 %v1202, %v1201
      %v1217 = vpack.c.b16 %v1204, %v1203
      %v1218 = vpack.c.b16 %v1206, %v1205
      %v1219 = vpack.c.b16 %v1208, %v1207
      %v1220 = vpack.c.b16 %v1210, %v1209
      %v1221 = vpack.c.b16 %v1212, %v1211
      %v1222 = vpack.c.b16 %v1214, %v1213
      %1231 = vmatprep.subr.bf16.mxu0 0
      %1232 = vmatpush1.bf16.msra.mxu0 %v1215
      %1233 = vmatprep.subr.bf16.mxu0 0
      %1234 = vmatpush1.bf16.msra.mxu0 %v1216
      %1235 = vmatprep.subr.bf16.mxu0 0
      %1236 = vmatpush1.bf16.msra.mxu0 %v1217
      %1237 = vmatprep.subr.bf16.mxu0 0
      %1238 = vmatpush1.bf16.msra.mxu0 %v1218
      %1239 = vmatprep.subr.bf16.mxu0 0
      %1240 = vmatpush1.bf16.msra.mxu0 %v1219
      %1241 = vmatprep.subr.bf16.mxu0 0
      %1242 = vmatpush1.bf16.msra.mxu0 %v1220
      %1243 = vmatprep.subr.bf16.mxu0 0
      %1244 = vmatpush1.bf16.msra.mxu0 %v1221
      %1245 = vmatprep.subr.bf16.mxu0 0
      %1246 = vmatpush1.bf16.msra.mxu0 %v1222
      %1247 = vmatprep.subr.bf16.mxu0 0
      %1248 = vmatpush1.bf16.msra.mxu0 0
      %1249 = vmatprep.subr.bf16.mxu0 0
      %1250 = vmatpush1.bf16.msra.mxu0 0
      %1251 = vmatprep.subr.bf16.mxu0 0
      %1252 = vmatpush1.bf16.msra.mxu0 0
      %1253 = vmatprep.subr.bf16.mxu0 0
      %1254 = vmatpush1.bf16.msra.mxu0 0
      %1255 = vmatprep.subr.bf16.mxu0 0
      %1256 = vmatpush1.bf16.msra.mxu0 0
      %1257 = vmatprep.subr.bf16.mxu0 0
      %1258 = vmatpush1.bf16.msra.mxu0 0
      %1259 = vmatprep.subr.bf16.mxu0 0
      %1260 = vmatpush1.bf16.msra.mxu0 0
      %1261 = vmatprep.subr.bf16.mxu0 0
      %1262 = vmatpush1.bf16.msra.mxu0 0
      %1263 = vmatprep.mubr.bf16.mxu0 0
      %1264 = vmatmul.mubr.bf16.gmra.mrb[0].mxu0 %v1148
      %v1265 = vpop.f32.mrb[0].mxu0
      %v1266 = vadd.f32 %v1181, %v1265
      %v1267 = vpop.f32.mrb[0].mxu0
      %v1268 = vpop.f32.mrb[0].mxu0
      %v1269 = vadd.f32 %v1181, %v1268
      %v1270 = vpop.f32.mrb[0].mxu0
      %1271 = vmatprep.mubr.bf16.mxu0 0
      %1272 = vmatmul.mubr.bf16.gmra.mrb[0].mxu0 %v1149
      %v1273 = vpop.f32.mrb[0].mxu0
      %v1274 = vadd.f32 %v1181, %v1273
      %v1275 = vpop.f32.mrb[0].mxu0
      %v1276 = vpop.f32.mrb[0].mxu0
      %v1277 = vadd.f32 %v1181, %v1276
      %v1278 = vpop.f32.mrb[0].mxu0
      %1279 = vmatprep.mubr.bf16.mxu0 0
      %1280 = vmatmul.mubr.bf16.gmra.mrb[0].mxu0 %v1150
      %v1281 = vpop.f32.mrb[0].mxu0
      %v1282 = vadd.f32 %v1181, %v1281
      %v1283 = vpop.f32.mrb[0].mxu0
      %v1284 = vpop.f32.mrb[0].mxu0
      %v1285 = vadd.f32 %v1181, %v1284
      %v1286 = vpop.f32.mrb[0].mxu0
      %1287 = vmatprep.mubr.bf16.mxu0 0
      %1288 = vmatmul.mubr.bf16.gmra.mrb[0].mxu0 %v1151
      %v1289 = vpop.f32.mrb[0].mxu0
      %v1290 = vadd.f32 %v1181, %v1289
      %v1291 = vpop.f32.mrb[0].mxu0
      %v1292 = vpop.f32.mrb[0].mxu0
      %v1293 = vadd.f32 %v1181, %v1292
      %v1294 = vpop.f32.mrb[0].mxu0
      %1295 = vmatprep.mubr.bf16.mxu0 0
      %1296 = vmatmul.mubr.bf16.gmra.mrb[0].mxu0 %v1152
      %v1297 = vpop.f32.mrb[0].mxu0
      %v1298 = vadd.f32 %v1181, %v1297
      %v1299 = vpop.f32.mrb[0].mxu0
      %v1300 = vpop.f32.mrb[0].mxu0
      %v1301 = vadd.f32 %v1181, %v1300
      %v1302 = vpop.f32.mrb[0].mxu0
      %1303 = vmatprep.mubr.bf16.mxu0 0
      %1304 = vmatmul.mubr.bf16.gmra.mrb[0].mxu0 %v1153
      %v1305 = vpop.f32.mrb[0].mxu0
      %v1306 = vadd.f32 %v1181, %v1305
      %v1307 = vpop.f32.mrb[0].mxu0
      %v1308 = vpop.f32.mrb[0].mxu0
      %v1309 = vadd.f32 %v1181, %v1308
      %v1310 = vpop.f32.mrb[0].mxu0
      %1311 = vmatprep.mubr.bf16.mxu0 0
      %1312 = vmatmul.mubr.bf16.gmra.mrb[0].mxu0 %v1154
      %v1313 = vpop.f32.mrb[0].mxu0
      %v1314 = vadd.f32 %v1181, %v1313
      %v1315 = vpop.f32.mrb[0].mxu0
      %v1316 = vpop.f32.mrb[0].mxu0
      %v1317 = vadd.f32 %v1181, %v1316
      %v1318 = vpop.f32.mrb[0].mxu0
      %1319 = vmatprep.mubr.bf16.mxu0 0
      %1320 = vmatmul.mubr.bf16.gmra.mrb[0].mxu0 %v1155
      %v1321 = vpop.f32.mrb[0].mxu0
      %v1322 = vadd.f32 %v1181, %v1321
      %v1323 = vpop.f32.mrb[0].mxu0
      %v1324 = vpop.f32.mrb[0].mxu0
      %v1325 = vadd.f32 %v1181, %v1324
      %v1326 = vpop.f32.mrb[0].mxu0
      %1327 = vmatprep.mubr.bf16.mxu0 0
      %1328 = vmatmul.mubr.bf16.gmra.mrb[0].mxu0 %v1156
      %v1329 = vpop.f32.mrb[0].mxu0
      %v1330 = vadd.f32 %v1181, %v1329
      %v1331 = vpop.f32.mrb[0].mxu0
      %v1332 = vpop.f32.mrb[0].mxu0
      %v1333 = vadd.f32 %v1181, %v1332
      %v1334 = vpop.f32.mrb[0].mxu0
      %1335 = vmatprep.mubr.bf16.mxu0 0
      %1336 = vmatmul.mubr.bf16.gmra.mrb[0].mxu0 %v1157
      %v1337 = vpop.f32.mrb[0].mxu0
      %v1338 = vadd.f32 %v1181, %v1337
      %v1339 = vpop.f32.mrb[0].mxu0
      %v1340 = vpop.f32.mrb[0].mxu0
      %v1341 = vadd.f32 %v1181, %v1340
      %v1342 = vpop.f32.mrb[0].mxu0
      %1343 = vmatprep.mubr.bf16.mxu0 0
      %1344 = vmatmul.mubr.bf16.gmra.mrb[0].mxu0 %v1158
      %v1345 = vpop.f32.mrb[0].mxu0
      %v1346 = vadd.f32 %v1181, %v1345
      %v1347 = vpop.f32.mrb[0].mxu0
      %v1348 = vpop.f32.mrb[0].mxu0
      %v1349 = vadd.f32 %v1181, %v1348
      %v1350 = vpop.f32.mrb[0].mxu0
      %1351 = vmatprep.mubr.bf16.mxu0 0
      %1352 = vmatmul.mubr.bf16.gmra.mrb[0].mxu0 %v1159
      %v1353 = vpop.f32.mrb[0].mxu0
      %v1354 = vadd.f32 %v1181, %v1353
      %v1355 = vpop.f32.mrb[0].mxu0
      %v1356 = vpop.f32.mrb[0].mxu0
      %v1357 = vadd.f32 %v1181, %v1356
      %v1358 = vpop.f32.mrb[0].mxu0
      %1359 = vdwg.mxu0
      %v1360 = vmul.f32 %v1266, 0.1
      %v1361 = vmul.f32 %v1269, 0.1
      %v1362 = vmul.f32 %v1274, 0.1
      %v1363 = vmul.f32 %v1277, 0.1
      %v1364 = vmul.f32 %v1282, 0.1
      %v1365 = vmul.f32 %v1285, 0.1
      %v1366 = vmul.f32 %v1290, 0.1
      %v1367 = vmul.f32 %v1293, 0.1
      %v1368 = vmul.f32 %v1298, 0.1
      %v1369 = vmul.f32 %v1301, 0.1
      %v1370 = vmul.f32 %v1306, 0.1
      %v1371 = vmul.f32 %v1309, 0.1
      %v1372 = vmul.f32 %v1314, 0.1
      %v1373 = vmul.f32 %v1317, 0.1
      %v1374 = vmul.f32 %v1322, 0.1
      %v1375 = vmul.f32 %v1325, 0.1
      %v1376 = vmul.f32 %v1330, 0.1
      %v1377 = vmul.f32 %v1333, 0.1
      %v1378 = vmul.f32 %v1338, 0.1
      %v1379 = vmul.f32 %v1341, 0.1
      %v1380 = vmul.f32 %v1346, 0.1
      %v1381 = vmul.f32 %v1349, 0.1
      %v1382 = vmul.f32 %v1354, 0.1
      %v1383 = vmul.f32 %v1357, 0.1
      %v1384 = vmax.f32 %v1266, %v1360
      %v1385 = vmax.f32 %v1269, %v1361
      %v1386 = vmax.f32 %v1274, %v1362
      %v1387 = vmax.f32 %v1277, %v1363
      %v1388 = vmax.f32 %v1282, %v1364
      %v1389 = vmax.f32 %v1285, %v1365
      %v1390 = vmax.f32 %v1290, %v1366
      %v1391 = vmax.f32 %v1293, %v1367
      %v1392 = vmax.f32 %v1298, %v1368
      %v1393 = vmax.f32 %v1301, %v1369
      %v1394 = vmax.f32 %v1306, %v1370
      %v1395 = vmax.f32 %v1309, %v1371
      %v1396 = vmax.f32 %v1314, %v1372
      %v1397 = vmax.f32 %v1317, %v1373
      %v1398 = vmax.f32 %v1322, %v1374
      %v1399 = vmax.f32 %v1325, %v1375
      %v1400 = vmax.f32 %v1330, %v1376
      %v1401 = vmax.f32 %v1333, %v1377
      %v1402 = vmax.f32 %v1338, %v1378
      %v1403 = vmax.f32 %v1341, %v1379
      %v1404 = vmax.f32 %v1346, %v1380
      %v1405 = vmax.f32 %v1349, %v1381
      %v1406 = vmax.f32 %v1354, %v1382
      %v1407 = vmax.f32 %v1357, %v1383
      %1408 = vst [vmem:[%s246] sm:$0xff] %v1384
      %1409 = vst [vmem:[%s246 + $0x8] sm:$0xff] %v1385
      %1410 = vst [vmem:[%s246 + $0x10] sm:$0xff] %v1386
      %1411 = vst [vmem:[%s246 + $0x18] sm:$0xff] %v1387
      %1412 = vst [vmem:[%s246 + $0x20] sm:$0xff] %v1388
      %1413 = vst [vmem:[%s246 + $0x28] sm:$0xff] %v1389
      %1414 = vst [vmem:[%s246 + $0x30] sm:$0xff] %v1390
      %1415 = vst [vmem:[%s246 + $0x38] sm:$0xff] %v1391
      %1416 = vst [vmem:[%s246 + $0x40] sm:$0xff] %v1392
      %1417 = vst [vmem:[%s246 + $0x48] sm:$0xff] %v1393
      %1418 = vst [vmem:[%s246 + $0x50] sm:$0xff] %v1394
      %1419 = vst [vmem:[%s246 + $0x58] sm:$0xff] %v1395
      %1420 = vst [vmem:[%s246 + $0x60] sm:$0xff] %v1396
      %1421 = vst [vmem:[%s246 + $0x68] sm:$0xff] %v1397
      %1422 = vst [vmem:[%s246 + $0x70] sm:$0xff] %v1398
      %1423 = vst [vmem:[%s246 + $0x78] sm:$0xff] %v1399
      %1424 = vst [vmem:[%s246 + $0x80] sm:$0xff] %v1400
      %1425 = vst [vmem:[%s246 + $0x88] sm:$0xff] %v1401
      %1426 = vst [vmem:[%s246 + $0x90] sm:$0xff] %v1402
      %1427 = vst [vmem:[%s246 + $0x98] sm:$0xff] %v1403
      %1428 = vst [vmem:[%s246 + $0xa0] sm:$0xff] %v1404
      %1429 = vst [vmem:[%s246 + $0xa8] sm:$0xff] %v1405
      %1430 = vst [vmem:[%s246 + $0xb0] sm:$0xff] %v1406
      %1431 = vst [vmem:[%s246 + $0xb8] sm:$0xff] %v1407
      %s1432 = smul.u32 24, %s21
      %p1433 = scmp.lt.s32.totalorder %s20, 1
      %s1434 = scalar_select %p1433, %s20, 1
      %p1435 = scmp.lt.s32.totalorder %s1432, 47
      %s1436 = scalar_select %p1435, %s1432, 47
      %s1437 = smul.addr %s1434, 48
      %s1438 = sadd.s32 %s1436, %s1437
      %s1439 = smul.addr %s1438, 8
      %s1440 = scalar_lea.vmem %s5, %s1439
      // Predicated region
      $region41: #{conv_out_forward.1} parent=39 // pred_check
        %p1441 = pneg %p158
      $region42: #{conv_out_forward.1} parent=39 // pred_check_branch
        %1443 = sbr.rel (%p1441) target = $region44
      $region43: #{conv_out_forward.1} parent=39 // pred_region
        %s1444 = smul.u32 24, %s21
      $region44: #{conv_out_forward.1} parent=39 // pred_fallthru
        _
    $region40: #{conv_out_forward.1} parent=5 // pred_fallthru
      _
    %p1445 = scmp.le.s32.totalorder 2, %s11
    // Predicated region
    $region45: #{conv_out_forward.1} parent=5 // pred_check
      %p1446 = pneg %p1445
    $region46: #{conv_out_forward.1} parent=5 // pred_check_branch
      %1448 = sbr.rel (%p1446) target = $region48
    $region47: #{conv_out_forward.1} parent=5 // pred_region
      %s1449 = ssub.s32 %s11, 2
      // Predicated region
      $region49: #{conv_out_forward.1} parent=47 // pred_check
        %p1450 = pneg %p164
      $region50: #{conv_out_forward.1} parent=47 // pred_check_branch
        %1452 = sbr.rel (%p1450) target = $region52
      $region51: #{conv_out_forward.1} parent=47 // pred_region
        %s1453 = smul.u32 24, %s23
        %p1454 = scmp.lt.s32.totalorder %s22, 1
        %s1455 = scalar_select %p1454, %s22, 1
        %p1456 = scmp.lt.s32.totalorder %s1453, 47
        %s1457 = scalar_select %p1456, %s1453, 47
        %s1458 = smul.addr %s1455, 48
        %s1459 = sadd.s32 %s1457, %s1458
        %s1460 = smul.addr %s1459, 8
        %s1461 = scalar_lea.vmem %s5, %s1460
      $region52: #{conv_out_forward.1} parent=47 // pred_fallthru
        _
    $region48: #{conv_out_forward.1} parent=5 // pred_fallthru
      _
  $region6: #{conv_out_forward.1} parent=0 // loop_footer
    %s15 = sadd.s32 1, %s11
  $region7: #{conv_out_forward.1} parent=0 // loop_footer_branch
    %10 = sbr.rel target = $region3
  $region8: #{conv_out_forward.1} parent=0 // loop_exit
    _

</llo_original>
